<compile_context>
chip_gen: v7x
topology: tpu7x:2x2x1
jax: 0.10.0
libtpu: 0.0.40
codegen_flags: <defaults>
</compile_context>

<pallas_src>
import functools
import re

import jax
import jax.numpy as jnp
from jax.experimental import pallas as pl
from jax.experimental.pallas import tpu as pltpu


def mha_kernel(x_ref, wqkv_ref, wo_ref, bo_ref, o_ref, ctx_ref, *,
               n_head: int, head_dim: int, d_out: int,
               bf16_softmax: bool, approx_reciprocal: bool):
    Bt, T, d_in = x_ref.shape
    M = Bt * T

    # In-kernel bf16 cast (VPU work hidden under the MXU); x costs one HBM
    # read instead of read + write + read with a wrapper-side cast.
    x = x_ref[...].reshape(M, d_in).astype(jnp.bfloat16)

    # Fused QKV projection: one wide MXU matmul, f32 accumulation.
    qkv = jnp.dot(x, wqkv_ref[...], preferred_element_type=jnp.float32)  # (M, 3*d_out)

    # Softmax scale folded into Q once (cheaper than scaling (T, T) logits).
    scale = 1.0 / (float(head_dim) ** 0.5)
    q = (qkv[:, :d_out] * scale).reshape(Bt, T, d_out).astype(jnp.bfloat16)
    k = qkv[:, d_out:2 * d_out].reshape(Bt, T, d_out).astype(jnp.bfloat16)
    v = qkv[:, 2 * d_out:].reshape(Bt, T, d_out).astype(jnp.bfloat16)

    # Causal mask (triu, diag=1). Every row keeps at least its diagonal key,
    # so the max-subtract softmax never sees an all -inf row.
    row = jax.lax.broadcasted_iota(jnp.int32, (T, T), 0)
    col = jax.lax.broadcasted_iota(jnp.int32, (T, T), 1)
    causal = (col > row)[None, :, :]                                     # (1, T, T)

    # Per-head attention; each head's (already-normalized) context is written
    # into the persistent bf16 buffer so the output projection below is a
    # single full-depth (K=d_out) MXU matmul.
    for h in range(n_head):                           # small static head loop
        lo = h * head_dim
        q_h = q[:, :, lo:lo + head_dim]               # (Bt, T, hd) bf16
        k_h = k[:, :, lo:lo + head_dim]
        v_h = v[:, :, lo:lo + head_dim]

        # Scores: contract on the last dim directly (no explicit transpose).
        s = jnp.einsum('bqd,bkd->bqk', q_h, k_h,
                       preferred_element_type=jnp.float32)              # (Bt, T, T)
        s = jnp.where(causal, -jnp.inf, s)

        m = jnp.max(s, axis=-1, keepdims=True)                          # f32 stats
        if bf16_softmax:
            # bf16 EUP exp (v6e/v7x); key-axis sum stays f32.
            p = jnp.exp((s - m).astype(jnp.bfloat16))
            denom = jnp.sum(p.astype(jnp.float32), axis=-1, keepdims=True)
            p_mm = p
        else:
            p = jnp.exp(s - m)                                           # f32 (v5e)
            denom = jnp.sum(p, axis=-1, keepdims=True)
            p_mm = p.astype(jnp.bfloat16)

        # Unnormalized PV matmul first, then normalize the (T, hd) context —
        # moves the VPU multiply off the (T, T) tile (~T/hd less VPU work).
        ctx = jnp.einsum('bqk,bkd->bqd', p_mm, v_h,
                         preferred_element_type=jnp.float32)             # (Bt, T, hd)
        if approx_reciprocal:
            ctx = ctx * pl.reciprocal(denom, approx=True)
        else:
            ctx = ctx / denom
        # (dropout p=0 -> identity)

        ctx_ref[:, lo:lo + head_dim] = ctx.reshape(M, head_dim).astype(jnp.bfloat16)

    # Single output projection (K = d_out) + bias.
    out = jnp.dot(ctx_ref[...], wo_ref[...], preferred_element_type=jnp.float32)
    out = out + bo_ref[...].astype(jnp.float32)                          # (1, d_out) bcast
    o_ref[...] = out.reshape(Bt, T, d_out).astype(o_ref.dtype)


def _tpu_generation() -> int:
    """Best-effort TPU generation (5, 6, 7, ...); defaults to 6 if unknown."""
    try:
        kind = jax.devices()[0].device_kind.lower()
        m = re.search(r"v\s*(\d+)", kind) or re.search(r"(\d+)", kind)
        if m:
            return int(m.group(1))
    except Exception:
        pass
    return 6


def _estimate_vmem_bytes(Bt, T, d_in, d_out, x_bytes, out_bytes):
    """Conservative per-grid-step VMEM residency estimate (bytes)."""
    M = Bt * T
    b = 0
    b += 2 * M * d_in * x_bytes            # x block (double-buffered)
    b += 2 * M * d_out * out_bytes         # out block (double-buffered)
    b += 2 * d_in * 3 * d_out * 2          # fused W_qkv bf16 (assume 2 buffers)
    b += 2 * d_out * d_out * 2             # W_o bf16
    b += 2 * d_out * 4                     # b_o f32
    b += M * d_out * 2                     # ctx scratch bf16
    b += M * 3 * d_out * (4 + 2)           # qkv f32 + q/k/v bf16
    b += 2 * Bt * T * T * (4 + 4)          # ~2 heads of live (s, p) tiles
    b += M * d_out * 4                     # f32 out before cast
    return b


def _pick_batch_tile(B, T, d_in, d_out, x_bytes, out_bytes, vmem_budget, gen):
    """Largest batch tile whose estimated residency fits the VMEM budget.
    v7x (2 TensorCores): prefer an even grid with >= 2 steps so the 'parallel'
    batch axis splits evenly across cores.  v5e/v6e (single TC): extra grid
    steps only cost ~0.35us each, so take the biggest tile that fits."""
    def fits(bt):
        return _estimate_vmem_bytes(bt, T, d_in, d_out, x_bytes, out_bytes) <= vmem_budget

    divisors = [bt for bt in range(1, B + 1) if B % bt == 0]
    if gen >= 7 and B >= 2:
        cand = [bt for bt in divisors
                if (B // bt) >= 2 and (B // bt) % 2 == 0 and fits(bt)]
        if cand:
            return max(cand)
    cand = [bt for bt in divisors if fits(bt)]
    return max(cand) if cand else 1


def prepare_mha_params(wq, wk, wv, wo, bo):
    """One-time parameter prep (hoisted out of the per-call path): fuse the
    QKV weights and cast the MXU operands to bf16."""
    wqkv = jnp.concatenate([wq, wk, wv], axis=1).astype(jnp.bfloat16)    # (d_in, 3*d_out)
    return wqkv, wo.astype(jnp.bfloat16), bo.astype(jnp.float32)


def multi_head_attention(x, params, *, n_head: int, approx_reciprocal: bool = True):
    """x: (B, T, d_in) in its native dtype; params from prepare_mha_params."""
    wqkv, wo_bf, bo_f32 = params
    B, T, d_in = x.shape
    d_out = wo_bf.shape[0]
    assert d_out % n_head == 0
    head_dim = d_out // n_head
    out_dtype = x.dtype

    gen = _tpu_generation()
    phys_vmem = (64 << 20) if gen >= 7 else (128 << 20)
    x_bytes = jnp.dtype(x.dtype).itemsize
    out_bytes = jnp.dtype(out_dtype).itemsize

    Bt = _pick_batch_tile(B, T, d_in, d_out, x_bytes, out_bytes,
                          vmem_budget=int(phys_vmem * 0.7), gen=gen)
    grid_b = B // Bt

    est = _estimate_vmem_bytes(Bt, T, d_in, d_out, x_bytes, out_bytes)
    vmem_limit = int(min(phys_vmem * 0.9, max(est * 1.5, 32 << 20)))

    kernel = functools.partial(
        mha_kernel, n_head=n_head, head_dim=head_dim, d_out=d_out,
        bf16_softmax=(gen >= 6), approx_reciprocal=approx_reciprocal)

    def build(weight_pipeline_mode):
        wkw = ({} if weight_pipeline_mode is None
               else {"pipeline_mode": weight_pipeline_mode})
        return pl.pallas_call(
            kernel,
            out_shape=jax.ShapeDtypeStruct((B, T, d_out), out_dtype),
            grid_spec=pltpu.PrefetchScalarGridSpec(
                num_scalar_prefetch=0,
                grid=(grid_b,),
                in_specs=[
                    pl.BlockSpec((Bt, T, d_in), lambda b: (b, 0, 0)),            # x
                    pl.BlockSpec((d_in, 3 * d_out), lambda b: (0, 0), **wkw),    # W_qkv
                    pl.BlockSpec((d_out, d_out), lambda b: (0, 0), **wkw),       # W_o
                    pl.BlockSpec((1, d_out), lambda b: (0, 0), **wkw),           # b_o
                ],
                out_specs=pl.BlockSpec((Bt, T, d_out), lambda b: (b, 0, 0)),
                scratch_shapes=[pltpu.VMEM((Bt * T, d_out), jnp.bfloat16)],      # ctx buffer
            ),
            compiler_params=pltpu.CompilerParams(
                dimension_semantics=("parallel",),
                vmem_limit_bytes=vmem_limit),
        )

    # Constant-index weight blocks have nothing to prefetch -> single pipeline
    # buffer (halves their VMEM residency).  Fall back to default double
    # buffering if this Pallas build rejects pipeline_mode on these specs.
    try:
        return build(pl.Buffered(1))(x, wqkv, wo_bf, bo_f32)
    except Exception:
        return build(None)(x, wqkv, wo_bf, bo_f32)


def _reference(x, wq, wk, wv, wo, bo, n_head):
    """Pure-JAX f32 reference mirroring the PyTorch forward (dropout p=0)."""
    B, T, d_in = x.shape
    d_out = wq.shape[1]
    hd = d_out // n_head
    q = (x @ wq).reshape(B, T, n_head, hd).transpose(0, 2, 1, 3)
    k = (x @ wk).reshape(B, T, n_head, hd).transpose(0, 2, 1, 3)
    v = (x @ wv).reshape(B, T, n_head, hd).transpose(0, 2, 1, 3)
    omega = jnp.einsum('bhqd,bhkd->bhqk', q, k)
    mask = jnp.triu(jnp.ones((T, T), bool), k=1)
    omega = jnp.where(mask, -jnp.inf, omega)
    att = jax.nn.softmax(omega / (hd ** 0.5), axis=-1)
    out = jnp.einsum('bhqk,bhkd->bhqd', att, v).transpose(0, 2, 1, 3).reshape(B, T, d_out)
    return out @ wo + bo[0]


if __name__ == "__main__":
    # Small shapes consistent with the module's forward.
    B, T, d_in, d_out, n_head = 2, 8, 32, 32, 4

    key = jax.random.PRNGKey(0)
    kx, kq, kk, kv, ko, kb = jax.random.split(key, 6)

    x = jax.random.normal(kx, (B, T, d_in), dtype=jnp.float32)
    # Parameters stored as (in, out), i.e. W^T of nn.Linear.
    wq = jax.random.normal(kq, (d_in, d_out), dtype=jnp.float32) * 0.1
    wk = jax.random.normal(kk, (d_in, d_out), dtype=jnp.float32) * 0.1
    wv = jax.random.normal(kv, (d_in, d_out), dtype=jnp.float32) * 0.1
    wo = jax.random.normal(ko, (d_out, d_out), dtype=jnp.float32) * 0.1
    bo = jax.random.normal(kb, (1, d_out), dtype=jnp.float32) * 0.1

    params = prepare_mha_params(wq, wk, wv, wo, bo)   # one-time weight prep
    out = multi_head_attention(x, params, n_head=n_head)
    out = jax.block_until_ready(out)

    ref = _reference(x, wq, wk, wv, wo, bo, n_head)
    assert out.shape == (B, T, d_out)
    # bf16 MXU operands / bf16 softmax exp / approx reciprocal vs f32 reference.
    assert jnp.allclose(out, ref, atol=3e-2, rtol=3e-2), "mismatch vs reference"

    print("KERNEL_OK")
</pallas_src>

<mosaic_0001>
module attributes {stable_mosaic.version = 11 : i64} {
  func.func @mha_kernel(%arg0: i32, %arg1: memref<2x8x32xf32, #tpu.memory_space<vmem>>, %arg2: memref<32x96xbf16, #tpu.memory_space<vmem>>, %arg3: memref<32x32xbf16, #tpu.memory_space<vmem>>, %arg4: memref<1x32xf32, #tpu.memory_space<vmem>>, %arg5: memref<2x8x32xf32, #tpu.memory_space<vmem>>, %arg6: memref<16x32xbf16, #tpu.memory_space<vmem>>) attributes {dimension_semantics = [#tpu.dimension_semantics<parallel>], iteration_bounds = array<i64: 1>, scalar_prefetch = 0 : i64, scratch_operands = 1 : i64, tpu.core_type = #tpu.core_type<tc>, window_params = [{transform_indices = @transform_0, window_bounds = array<i64: 2, 8, 32>}, {pipeline_mode = #tpu.pipeline_mode<synchronous>, transform_indices = @transform_1, window_bounds = array<i64: 32, 96>}, {pipeline_mode = #tpu.pipeline_mode<synchronous>, transform_indices = @transform_2, window_bounds = array<i64: 32, 32>}, {pipeline_mode = #tpu.pipeline_mode<synchronous>, transform_indices = @transform_3, window_bounds = array<i64: 1, 32>}, {transform_indices = @transform_4, window_bounds = array<i64: 2, 8, 32>}]} {
    %c0 = arith.constant 0 : index
    %c0_0 = arith.constant 0 : index
    %c0_1 = arith.constant 0 : index
    %0 = vector.load %arg1[%c0, %c0_0, %c0_1] : memref<2x8x32xf32, #tpu.memory_space<vmem>>, vector<2x8x32xf32>
    %1 = vector.shape_cast %0 : vector<2x8x32xf32> to vector<16x32xf32>
    %2 = arith.truncf %1 : vector<16x32xf32> to vector<16x32xbf16>
    %c0_2 = arith.constant 0 : index
    %c0_3 = arith.constant 0 : index
    %3 = vector.load %arg2[%c0_2, %c0_3] : memref<32x96xbf16, #tpu.memory_space<vmem>>, vector<32x96xbf16>
    %cst = arith.constant dense<0.000000e+00> : vector<16x96xf32>
    %4 = tpu.matmul %2, %3, %cst {dimension_numbers = #tpu.dot_dimension_numbers<[1], [0], [0], [1], [0, 0, 1, 1], [], []>} : vector<16x32xbf16>, vector<32x96xbf16>, vector<16x96xf32> -> vector<16x96xf32>
    %5 = vector.extract_strided_slice %4 {offsets = [0, 0], sizes = [16, 32], strides = [1, 1]} : vector<16x96xf32> to vector<16x32xf32>
    %cst_4 = arith.constant 0.353553385 : f32
    %6 = vector.broadcast %cst_4 : f32 to vector<16x32xf32>
    %7 = arith.mulf %5, %6 : vector<16x32xf32>
    %8 = vector.shape_cast %7 : vector<16x32xf32> to vector<2x8x32xf32>
    %9 = arith.truncf %8 : vector<2x8x32xf32> to vector<2x8x32xbf16>
    %10 = vector.extract_strided_slice %4 {offsets = [0, 32], sizes = [16, 32], strides = [1, 1]} : vector<16x96xf32> to vector<16x32xf32>
    %11 = vector.shape_cast %10 : vector<16x32xf32> to vector<2x8x32xf32>
    %12 = arith.truncf %11 : vector<2x8x32xf32> to vector<2x8x32xbf16>
    %13 = vector.extract_strided_slice %4 {offsets = [0, 64], sizes = [16, 32], strides = [1, 1]} : vector<16x96xf32> to vector<16x32xf32>
    %14 = vector.shape_cast %13 : vector<16x32xf32> to vector<2x8x32xf32>
    %15 = arith.truncf %14 : vector<2x8x32xf32> to vector<2x8x32xbf16>
    %16 = tpu.iota {dimensions = array<i32: 0>} : vector<8x8xi32>
    %17 = tpu.iota {dimensions = array<i32: 1>} : vector<8x8xi32>
    %18 = arith.cmpi sgt, %17, %16 : vector<8x8xi32>
    %19 = vector.shape_cast %18 : vector<8x8xi1> to vector<1x8x8xi1>
    %20 = vector.extract_strided_slice %9 {offsets = [0, 0, 0], sizes = [2, 8, 8], strides = [1, 1, 1]} : vector<2x8x32xbf16> to vector<2x8x8xbf16>
    %21 = vector.extract_strided_slice %12 {offsets = [0, 0, 0], sizes = [2, 8, 8], strides = [1, 1, 1]} : vector<2x8x32xbf16> to vector<2x8x8xbf16>
    %22 = vector.extract_strided_slice %15 {offsets = [0, 0, 0], sizes = [2, 8, 8], strides = [1, 1, 1]} : vector<2x8x32xbf16> to vector<2x8x8xbf16>
    "tpu.trace_start"() <{level = 10 : i32, message = "bqd,bkd->bqk"}> : () -> ()
    %cst_5 = arith.constant dense<0.000000e+00> : vector<2x8x8xf32>
    %23 = tpu.matmul %20, %21, %cst_5 {dimension_numbers = #tpu.dot_dimension_numbers<[2], [2], [1], [1], [0, 0, 0, 1, 1, 1], [0], [0]>} : vector<2x8x8xbf16>, vector<2x8x8xbf16>, vector<2x8x8xf32> -> vector<2x8x8xf32>
    %cst_6 = arith.constant 0xFF800000 : f32
    "tpu.trace_stop"() : () -> ()
    %24 = vector.shape_cast %19 : vector<1x8x8xi1> to vector<1x8x8xi1>
    %25 = vector.broadcast %24 : vector<1x8x8xi1> to vector<2x8x8xi1>
    %26 = vector.broadcast %cst_6 : f32 to vector<2x8x8xf32>
    %27 = arith.select %25, %26, %23 : vector<2x8x8xi1>, vector<2x8x8xf32>
    %cst_7 = arith.constant dense<0xFF800000> : vector<2x8xf32>
    %28 = vector.multi_reduction <maximumf>, %27, %cst_7 [2] : vector<2x8x8xf32> to vector<2x8xf32>
    %29 = vector.shape_cast %28 : vector<2x8xf32> to vector<2x8x1xf32>
    %30 = vector.broadcast %29 : vector<2x8x1xf32> to vector<2x8x8xf32>
    %31 = arith.subf %27, %30 : vector<2x8x8xf32>
    %32 = arith.truncf %31 : vector<2x8x8xf32> to vector<2x8x8xbf16>
    %33 = math.exp %32 : vector<2x8x8xbf16>
    %34 = arith.extf %33 : vector<2x8x8xbf16> to vector<2x8x8xf32>
    %cst_8 = arith.constant dense<0.000000e+00> : vector<2x8xf32>
    %35 = vector.multi_reduction <add>, %34, %cst_8 [2] : vector<2x8x8xf32> to vector<2x8xf32>
    %36 = vector.shape_cast %35 : vector<2x8xf32> to vector<2x8x1xf32>
    "tpu.trace_start"() <{level = 10 : i32, message = "bqk,bkd->bqd"}> : () -> ()
    %cst_9 = arith.constant dense<0.000000e+00> : vector<2x8x8xf32>
    %37 = tpu.matmul %33, %22, %cst_9 {dimension_numbers = #tpu.dot_dimension_numbers<[2], [1], [1], [2], [0, 0, 0, 1, 1, 2], [0], [0]>} : vector<2x8x8xbf16>, vector<2x8x8xbf16>, vector<2x8x8xf32> -> vector<2x8x8xf32>
    "tpu.trace_stop"() : () -> ()
    %38 = tpu.reciprocal %36 {approx = true} : vector<2x8x1xf32> -> vector<2x8x1xf32>
    %39 = vector.broadcast %38 : vector<2x8x1xf32> to vector<2x8x8xf32>
    %40 = arith.mulf %37, %39 : vector<2x8x8xf32>
    %41 = vector.shape_cast %40 : vector<2x8x8xf32> to vector<16x8xf32>
    %42 = arith.truncf %41 : vector<16x8xf32> to vector<16x8xbf16>
    %c0_10 = arith.constant 0 : index
    %c0_11 = arith.constant 0 : index
    %43 = vector.load %arg6[%c0_10, %c0_11] : memref<16x32xbf16, #tpu.memory_space<vmem>>, vector<16x8xbf16>
    tpu.vector_store %arg6[%c0_10, %c0_11], %42 {strides = array<i32>} : memref<16x32xbf16, #tpu.memory_space<vmem>>, vector<16x8xbf16>,
    %44 = vector.extract_strided_slice %9 {offsets = [0, 0, 8], sizes = [2, 8, 8], strides = [1, 1, 1]} : vector<2x8x32xbf16> to vector<2x8x8xbf16>
    %45 = vector.extract_strided_slice %12 {offsets = [0, 0, 8], sizes = [2, 8, 8], strides = [1, 1, 1]} : vector<2x8x32xbf16> to vector<2x8x8xbf16>
    %46 = vector.extract_strided_slice %15 {offsets = [0, 0, 8], sizes = [2, 8, 8], strides = [1, 1, 1]} : vector<2x8x32xbf16> to vector<2x8x8xbf16>
    "tpu.trace_start"() <{level = 10 : i32, message = "bqd,bkd->bqk"}> : () -> ()
    %cst_12 = arith.constant dense<0.000000e+00> : vector<2x8x8xf32>
    %47 = tpu.matmul %44, %45, %cst_12 {dimension_numbers = #tpu.dot_dimension_numbers<[2], [2], [1], [1], [0, 0, 0, 1, 1, 1], [0], [0]>} : vector<2x8x8xbf16>, vector<2x8x8xbf16>, vector<2x8x8xf32> -> vector<2x8x8xf32>
    %cst_13 = arith.constant 0xFF800000 : f32
    "tpu.trace_stop"() : () -> ()
    %48 = vector.shape_cast %19 : vector<1x8x8xi1> to vector<1x8x8xi1>
    %49 = vector.broadcast %48 : vector<1x8x8xi1> to vector<2x8x8xi1>
    %50 = vector.broadcast %cst_13 : f32 to vector<2x8x8xf32>
    %51 = arith.select %49, %50, %47 : vector<2x8x8xi1>, vector<2x8x8xf32>
    %cst_14 = arith.constant dense<0xFF800000> : vector<2x8xf32>
    %52 = vector.multi_reduction <maximumf>, %51, %cst_14 [2] : vector<2x8x8xf32> to vector<2x8xf32>
    %53 = vector.shape_cast %52 : vector<2x8xf32> to vector<2x8x1xf32>
    %54 = vector.broadcast %53 : vector<2x8x1xf32> to vector<2x8x8xf32>
    %55 = arith.subf %51, %54 : vector<2x8x8xf32>
    %56 = arith.truncf %55 : vector<2x8x8xf32> to vector<2x8x8xbf16>
    %57 = math.exp %56 : vector<2x8x8xbf16>
    %58 = arith.extf %57 : vector<2x8x8xbf16> to vector<2x8x8xf32>
    %cst_15 = arith.constant dense<0.000000e+00> : vector<2x8xf32>
    %59 = vector.multi_reduction <add>, %58, %cst_15 [2] : vector<2x8x8xf32> to vector<2x8xf32>
    %60 = vector.shape_cast %59 : vector<2x8xf32> to vector<2x8x1xf32>
    "tpu.trace_start"() <{level = 10 : i32, message = "bqk,bkd->bqd"}> : () -> ()
    %cst_16 = arith.constant dense<0.000000e+00> : vector<2x8x8xf32>
    %61 = tpu.matmul %57, %46, %cst_16 {dimension_numbers = #tpu.dot_dimension_numbers<[2], [1], [1], [2], [0, 0, 0, 1, 1, 2], [0], [0]>} : vector<2x8x8xbf16>, vector<2x8x8xbf16>, vector<2x8x8xf32> -> vector<2x8x8xf32>
    "tpu.trace_stop"() : () -> ()
    %62 = tpu.reciprocal %60 {approx = true} : vector<2x8x1xf32> -> vector<2x8x1xf32>
    %63 = vector.broadcast %62 : vector<2x8x1xf32> to vector<2x8x8xf32>
    %64 = arith.mulf %61, %63 : vector<2x8x8xf32>
    %65 = vector.shape_cast %64 : vector<2x8x8xf32> to vector<16x8xf32>
    %66 = arith.truncf %65 : vector<16x8xf32> to vector<16x8xbf16>
    %c0_17 = arith.constant 0 : index
    %c8 = arith.constant 8 : index
    %67 = vector.load %arg6[%c0_17, %c8] : memref<16x32xbf16, #tpu.memory_space<vmem>>, vector<16x8xbf16>
    tpu.vector_store %arg6[%c0_17, %c8], %66 {strides = array<i32>} : memref<16x32xbf16, #tpu.memory_space<vmem>>, vector<16x8xbf16>,
    %68 = vector.extract_strided_slice %9 {offsets = [0, 0, 16], sizes = [2, 8, 8], strides = [1, 1, 1]} : vector<2x8x32xbf16> to vector<2x8x8xbf16>
    %69 = vector.extract_strided_slice %12 {offsets = [0, 0, 16], sizes = [2, 8, 8], strides = [1, 1, 1]} : vector<2x8x32xbf16> to vector<2x8x8xbf16>
    %70 = vector.extract_strided_slice %15 {offsets = [0, 0, 16], sizes = [2, 8, 8], strides = [1, 1, 1]} : vector<2x8x32xbf16> to vector<2x8x8xbf16>
    "tpu.trace_start"() <{level = 10 : i32, message = "bqd,bkd->bqk"}> : () -> ()
    %cst_18 = arith.constant dense<0.000000e+00> : vector<2x8x8xf32>
    %71 = tpu.matmul %68, %69, %cst_18 {dimension_numbers = #tpu.dot_dimension_numbers<[2], [2], [1], [1], [0, 0, 0, 1, 1, 1], [0], [0]>} : vector<2x8x8xbf16>, vector<2x8x8xbf16>, vector<2x8x8xf32> -> vector<2x8x8xf32>
    %cst_19 = arith.constant 0xFF800000 : f32
    "tpu.trace_stop"() : () -> ()
    %72 = vector.shape_cast %19 : vector<1x8x8xi1> to vector<1x8x8xi1>
    %73 = vector.broadcast %72 : vector<1x8x8xi1> to vector<2x8x8xi1>
    %74 = vector.broadcast %cst_19 : f32 to vector<2x8x8xf32>
    %75 = arith.select %73, %74, %71 : vector<2x8x8xi1>, vector<2x8x8xf32>
    %cst_20 = arith.constant dense<0xFF800000> : vector<2x8xf32>
    %76 = vector.multi_reduction <maximumf>, %75, %cst_20 [2] : vector<2x8x8xf32> to vector<2x8xf32>
    %77 = vector.shape_cast %76 : vector<2x8xf32> to vector<2x8x1xf32>
    %78 = vector.broadcast %77 : vector<2x8x1xf32> to vector<2x8x8xf32>
    %79 = arith.subf %75, %78 : vector<2x8x8xf32>
    %80 = arith.truncf %79 : vector<2x8x8xf32> to vector<2x8x8xbf16>
    %81 = math.exp %80 : vector<2x8x8xbf16>
    %82 = arith.extf %81 : vector<2x8x8xbf16> to vector<2x8x8xf32>
    %cst_21 = arith.constant dense<0.000000e+00> : vector<2x8xf32>
    %83 = vector.multi_reduction <add>, %82, %cst_21 [2] : vector<2x8x8xf32> to vector<2x8xf32>
    %84 = vector.shape_cast %83 : vector<2x8xf32> to vector<2x8x1xf32>
    "tpu.trace_start"() <{level = 10 : i32, message = "bqk,bkd->bqd"}> : () -> ()
    %cst_22 = arith.constant dense<0.000000e+00> : vector<2x8x8xf32>
    %85 = tpu.matmul %81, %70, %cst_22 {dimension_numbers = #tpu.dot_dimension_numbers<[2], [1], [1], [2], [0, 0, 0, 1, 1, 2], [0], [0]>} : vector<2x8x8xbf16>, vector<2x8x8xbf16>, vector<2x8x8xf32> -> vector<2x8x8xf32>
    "tpu.trace_stop"() : () -> ()
    %86 = tpu.reciprocal %84 {approx = true} : vector<2x8x1xf32> -> vector<2x8x1xf32>
    %87 = vector.broadcast %86 : vector<2x8x1xf32> to vector<2x8x8xf32>
    %88 = arith.mulf %85, %87 : vector<2x8x8xf32>
    %89 = vector.shape_cast %88 : vector<2x8x8xf32> to vector<16x8xf32>
    %90 = arith.truncf %89 : vector<16x8xf32> to vector<16x8xbf16>
    %c0_23 = arith.constant 0 : index
    %c16 = arith.constant 16 : index
    %91 = vector.load %arg6[%c0_23, %c16] : memref<16x32xbf16, #tpu.memory_space<vmem>>, vector<16x8xbf16>
    tpu.vector_store %arg6[%c0_23, %c16], %90 {strides = array<i32>} : memref<16x32xbf16, #tpu.memory_space<vmem>>, vector<16x8xbf16>,
    %92 = vector.extract_strided_slice %9 {offsets = [0, 0, 24], sizes = [2, 8, 8], strides = [1, 1, 1]} : vector<2x8x32xbf16> to vector<2x8x8xbf16>
    %93 = vector.extract_strided_slice %12 {offsets = [0, 0, 24], sizes = [2, 8, 8], strides = [1, 1, 1]} : vector<2x8x32xbf16> to vector<2x8x8xbf16>
    %94 = vector.extract_strided_slice %15 {offsets = [0, 0, 24], sizes = [2, 8, 8], strides = [1, 1, 1]} : vector<2x8x32xbf16> to vector<2x8x8xbf16>
    "tpu.trace_start"() <{level = 10 : i32, message = "bqd,bkd->bqk"}> : () -> ()
    %cst_24 = arith.constant dense<0.000000e+00> : vector<2x8x8xf32>
    %95 = tpu.matmul %92, %93, %cst_24 {dimension_numbers = #tpu.dot_dimension_numbers<[2], [2], [1], [1], [0, 0, 0, 1, 1, 1], [0], [0]>} : vector<2x8x8xbf16>, vector<2x8x8xbf16>, vector<2x8x8xf32> -> vector<2x8x8xf32>
    %cst_25 = arith.constant 0xFF800000 : f32
    "tpu.trace_stop"() : () -> ()
    %96 = vector.shape_cast %19 : vector<1x8x8xi1> to vector<1x8x8xi1>
    %97 = vector.broadcast %96 : vector<1x8x8xi1> to vector<2x8x8xi1>
    %98 = vector.broadcast %cst_25 : f32 to vector<2x8x8xf32>
    %99 = arith.select %97, %98, %95 : vector<2x8x8xi1>, vector<2x8x8xf32>
    %cst_26 = arith.constant dense<0xFF800000> : vector<2x8xf32>
    %100 = vector.multi_reduction <maximumf>, %99, %cst_26 [2] : vector<2x8x8xf32> to vector<2x8xf32>
    %101 = vector.shape_cast %100 : vector<2x8xf32> to vector<2x8x1xf32>
    %102 = vector.broadcast %101 : vector<2x8x1xf32> to vector<2x8x8xf32>
    %103 = arith.subf %99, %102 : vector<2x8x8xf32>
    %104 = arith.truncf %103 : vector<2x8x8xf32> to vector<2x8x8xbf16>
    %105 = math.exp %104 : vector<2x8x8xbf16>
    %106 = arith.extf %105 : vector<2x8x8xbf16> to vector<2x8x8xf32>
    %cst_27 = arith.constant dense<0.000000e+00> : vector<2x8xf32>
    %107 = vector.multi_reduction <add>, %106, %cst_27 [2] : vector<2x8x8xf32> to vector<2x8xf32>
    %108 = vector.shape_cast %107 : vector<2x8xf32> to vector<2x8x1xf32>
    "tpu.trace_start"() <{level = 10 : i32, message = "bqk,bkd->bqd"}> : () -> ()
    %cst_28 = arith.constant dense<0.000000e+00> : vector<2x8x8xf32>
    %109 = tpu.matmul %105, %94, %cst_28 {dimension_numbers = #tpu.dot_dimension_numbers<[2], [1], [1], [2], [0, 0, 0, 1, 1, 2], [0], [0]>} : vector<2x8x8xbf16>, vector<2x8x8xbf16>, vector<2x8x8xf32> -> vector<2x8x8xf32>
    "tpu.trace_stop"() : () -> ()
    %110 = tpu.reciprocal %108 {approx = true} : vector<2x8x1xf32> -> vector<2x8x1xf32>
    %111 = vector.broadcast %110 : vector<2x8x1xf32> to vector<2x8x8xf32>
    %112 = arith.mulf %109, %111 : vector<2x8x8xf32>
    %113 = vector.shape_cast %112 : vector<2x8x8xf32> to vector<16x8xf32>
    %114 = arith.truncf %113 : vector<16x8xf32> to vector<16x8xbf16>
    %c0_29 = arith.constant 0 : index
    %c24 = arith.constant 24 : index
    %115 = vector.load %arg6[%c0_29, %c24] : memref<16x32xbf16, #tpu.memory_space<vmem>>, vector<16x8xbf16>
    tpu.vector_store %arg6[%c0_29, %c24], %114 {strides = array<i32>} : memref<16x32xbf16, #tpu.memory_space<vmem>>, vector<16x8xbf16>,
    %c0_30 = arith.constant 0 : index
    %c0_31 = arith.constant 0 : index
    %116 = vector.load %arg6[%c0_30, %c0_31] : memref<16x32xbf16, #tpu.memory_space<vmem>>, vector<16x32xbf16>
    %c0_32 = arith.constant 0 : index
    %c0_33 = arith.constant 0 : index
    %117 = vector.load %arg3[%c0_32, %c0_33] : memref<32x32xbf16, #tpu.memory_space<vmem>>, vector<32x32xbf16>
    %cst_34 = arith.constant dense<0.000000e+00> : vector<16x32xf32>
    %118 = tpu.matmul %116, %117, %cst_34 {dimension_numbers = #tpu.dot_dimension_numbers<[1], [0], [0], [1], [0, 0, 1, 1], [], []>} : vector<16x32xbf16>, vector<32x32xbf16>, vector<16x32xf32> -> vector<16x32xf32>
    %c0_35 = arith.constant 0 : index
    %c0_36 = arith.constant 0 : index
    %119 = vector.load %arg4[%c0_35, %c0_36] : memref<1x32xf32, #tpu.memory_space<vmem>>, vector<1x32xf32>
    %120 = vector.broadcast %119 : vector<1x32xf32> to vector<16x32xf32>
    %121 = arith.addf %118, %120 : vector<16x32xf32>
    %122 = vector.shape_cast %121 : vector<16x32xf32> to vector<2x8x32xf32>
    %c0_37 = arith.constant 0 : index
    %c0_38 = arith.constant 0 : index
    %c0_39 = arith.constant 0 : index
    %123 = vector.load %arg5[%c0_37, %c0_38, %c0_39] : memref<2x8x32xf32, #tpu.memory_space<vmem>>, vector<2x8x32xf32>
    tpu.vector_store %arg5[%c0_37, %c0_38, %c0_39], %122 {strides = array<i32>} : memref<2x8x32xf32, #tpu.memory_space<vmem>>, vector<2x8x32xf32>,
    return
  }
  func.func @transform_0(%arg0: i32) -> (i32, i32, i32) {
    %c0_i32 = arith.constant 0 : i32
    %c0_i32_0 = arith.constant 0 : i32
    %c0_i32_1 = arith.constant 0 : i32
    return %arg0, %c0_i32, %c0_i32_0 : i32, i32, i32
  }
  func.func @transform_1(%arg0: i32) -> (i32, i32) {
    %c0_i32 = arith.constant 0 : i32
    %c0_i32_0 = arith.constant 0 : i32
    %c0_i32_1 = arith.constant 0 : i32
    return %c0_i32, %c0_i32_0 : i32, i32
  }
  func.func @transform_2(%arg0: i32) -> (i32, i32) {
    %c0_i32 = arith.constant 0 : i32
    %c0_i32_0 = arith.constant 0 : i32
    %c0_i32_1 = arith.constant 0 : i32
    return %c0_i32, %c0_i32_0 : i32, i32
  }
  func.func @transform_3(%arg0: i32) -> (i32, i32) {
    %c0_i32 = arith.constant 0 : i32
    %c0_i32_0 = arith.constant 0 : i32
    %c0_i32_1 = arith.constant 0 : i32
    return %c0_i32, %c0_i32_0 : i32, i32
  }
  func.func @transform_4(%arg0: i32) -> (i32, i32, i32) {
    %c0_i32 = arith.constant 0 : i32
    %c0_i32_0 = arith.constant 0 : i32
    %c0_i32_1 = arith.constant 0 : i32
    return %arg0, %c0_i32, %c0_i32_0 : i32, i32, i32
  }
}

module attributes {stable_mosaic.version = 11 : i64} {
  func.func @mha_kernel(%arg0: i32, %arg1: memref<2x8x32xf32, #tpu.memory_space<vmem>>, %arg2: memref<32x96xbf16, #tpu.memory_space<vmem>>, %arg3: memref<32x32xbf16, #tpu.memory_space<vmem>>, %arg4: memref<1x32xf32, #tpu.memory_space<vmem>>, %arg5: memref<2x8x32xf32, #tpu.memory_space<vmem>>, %arg6: memref<16x32xbf16, #tpu.memory_space<vmem>>) attributes {dimension_semantics = [#tpu.dimension_semantics<parallel>], iteration_bounds = array<i64: 1>, scalar_prefetch = 0 : i64, scratch_operands = 1 : i64, tpu.core_type = #tpu.core_type<tc>, window_params = [{transform_indices = @transform_0, window_bounds = array<i64: 2, 8, 32>}, {pipeline_mode = #tpu.pipeline_mode<synchronous>, transform_indices = @transform_1, window_bounds = array<i64: 32, 96>}, {pipeline_mode = #tpu.pipeline_mode<synchronous>, transform_indices = @transform_2, window_bounds = array<i64: 32, 32>}, {pipeline_mode = #tpu.pipeline_mode<synchronous>, transform_indices = @transform_3, window_bounds = array<i64: 1, 32>}, {transform_indices = @transform_4, window_bounds = array<i64: 2, 8, 32>}]} {
    %c0 = arith.constant 0 : index
    %c0_0 = arith.constant 0 : index
    %c0_1 = arith.constant 0 : index
    %0 = vector.load %arg1[%c0, %c0_0, %c0_1] : memref<2x8x32xf32, #tpu.memory_space<vmem>>, vector<2x8x32xf32>
    %1 = vector.shape_cast %0 : vector<2x8x32xf32> to vector<16x32xf32>
    %2 = arith.truncf %1 : vector<16x32xf32> to vector<16x32xbf16>
    %c0_2 = arith.constant 0 : index
    %c0_3 = arith.constant 0 : index
    %3 = vector.load %arg2[%c0_2, %c0_3] : memref<32x96xbf16, #tpu.memory_space<vmem>>, vector<32x96xbf16>
    %cst = arith.constant dense<0.000000e+00> : vector<16x96xf32>
    %4 = tpu.matmul %2, %3, %cst {dimension_numbers = #tpu.dot_dimension_numbers<[1], [0], [0], [1], [0, 0, 1, 1], [], []>} : vector<16x32xbf16>, vector<32x96xbf16>, vector<16x96xf32> -> vector<16x96xf32>
    %5 = vector.extract_strided_slice %4 {offsets = [0, 0], sizes = [16, 32], strides = [1, 1]} : vector<16x96xf32> to vector<16x32xf32>
    %cst_4 = arith.constant 0.353553385 : f32
    %6 = vector.broadcast %cst_4 : f32 to vector<16x32xf32>
    %7 = arith.mulf %5, %6 : vector<16x32xf32>
    %8 = vector.shape_cast %7 : vector<16x32xf32> to vector<2x8x32xf32>
    %9 = arith.truncf %8 : vector<2x8x32xf32> to vector<2x8x32xbf16>
    %10 = vector.extract_strided_slice %4 {offsets = [0, 32], sizes = [16, 32], strides = [1, 1]} : vector<16x96xf32> to vector<16x32xf32>
    %11 = vector.shape_cast %10 : vector<16x32xf32> to vector<2x8x32xf32>
    %12 = arith.truncf %11 : vector<2x8x32xf32> to vector<2x8x32xbf16>
    %13 = vector.extract_strided_slice %4 {offsets = [0, 64], sizes = [16, 32], strides = [1, 1]} : vector<16x96xf32> to vector<16x32xf32>
    %14 = vector.shape_cast %13 : vector<16x32xf32> to vector<2x8x32xf32>
    %15 = arith.truncf %14 : vector<2x8x32xf32> to vector<2x8x32xbf16>
    %16 = tpu.iota {dimensions = array<i32: 0>} : vector<8x8xi32>
    %17 = tpu.iota {dimensions = array<i32: 1>} : vector<8x8xi32>
    %18 = arith.cmpi sgt, %17, %16 : vector<8x8xi32>
    %19 = vector.shape_cast %18 : vector<8x8xi1> to vector<1x8x8xi1>
    %20 = vector.extract_strided_slice %9 {offsets = [0, 0, 0], sizes = [2, 8, 8], strides = [1, 1, 1]} : vector<2x8x32xbf16> to vector<2x8x8xbf16>
    %21 = vector.extract_strided_slice %12 {offsets = [0, 0, 0], sizes = [2, 8, 8], strides = [1, 1, 1]} : vector<2x8x32xbf16> to vector<2x8x8xbf16>
    %22 = vector.extract_strided_slice %15 {offsets = [0, 0, 0], sizes = [2, 8, 8], strides = [1, 1, 1]} : vector<2x8x32xbf16> to vector<2x8x8xbf16>
    "tpu.trace_start"() <{level = 10 : i32, message = "bqd,bkd->bqk"}> : () -> ()
    %cst_5 = arith.constant dense<0.000000e+00> : vector<2x8x8xf32>
    %23 = tpu.matmul %20, %21, %cst_5 {dimension_numbers = #tpu.dot_dimension_numbers<[2], [2], [1], [1], [0, 0, 0, 1, 1, 1], [0], [0]>} : vector<2x8x8xbf16>, vector<2x8x8xbf16>, vector<2x8x8xf32> -> vector<2x8x8xf32>
    %cst_6 = arith.constant 0xFF800000 : f32
    "tpu.trace_stop"() : () -> ()
    %24 = vector.shape_cast %19 : vector<1x8x8xi1> to vector<1x8x8xi1>
    %25 = vector.broadcast %24 : vector<1x8x8xi1> to vector<2x8x8xi1>
    %26 = vector.broadcast %cst_6 : f32 to vector<2x8x8xf32>
    %27 = arith.select %25, %26, %23 : vector<2x8x8xi1>, vector<2x8x8xf32>
    %cst_7 = arith.constant dense<0xFF800000> : vector<2x8xf32>
    %28 = vector.multi_reduction <maximumf>, %27, %cst_7 [2] : vector<2x8x8xf32> to vector<2x8xf32>
    %29 = vector.shape_cast %28 : vector<2x8xf32> to vector<2x8x1xf32>
    %30 = vector.broadcast %29 : vector<2x8x1xf32> to vector<2x8x8xf32>
    %31 = arith.subf %27, %30 : vector<2x8x8xf32>
    %32 = arith.truncf %31 : vector<2x8x8xf32> to vector<2x8x8xbf16>
    %33 = math.exp %32 : vector<2x8x8xbf16>
    %34 = arith.extf %33 : vector<2x8x8xbf16> to vector<2x8x8xf32>
    %cst_8 = arith.constant dense<0.000000e+00> : vector<2x8xf32>
    %35 = vector.multi_reduction <add>, %34, %cst_8 [2] : vector<2x8x8xf32> to vector<2x8xf32>
    %36 = vector.shape_cast %35 : vector<2x8xf32> to vector<2x8x1xf32>
    "tpu.trace_start"() <{level = 10 : i32, message = "bqk,bkd->bqd"}> : () -> ()
    %cst_9 = arith.constant dense<0.000000e+00> : vector<2x8x8xf32>
    %37 = tpu.matmul %33, %22, %cst_9 {dimension_numbers = #tpu.dot_dimension_numbers<[2], [1], [1], [2], [0, 0, 0, 1, 1, 2], [0], [0]>} : vector<2x8x8xbf16>, vector<2x8x8xbf16>, vector<2x8x8xf32> -> vector<2x8x8xf32>
    "tpu.trace_stop"() : () -> ()
    %38 = tpu.reciprocal %36 {approx = true} : vector<2x8x1xf32> -> vector<2x8x1xf32>
    %39 = vector.broadcast %38 : vector<2x8x1xf32> to vector<2x8x8xf32>
    %40 = arith.mulf %37, %39 : vector<2x8x8xf32>
    %41 = vector.shape_cast %40 : vector<2x8x8xf32> to vector<16x8xf32>
    %42 = arith.truncf %41 : vector<16x8xf32> to vector<16x8xbf16>
    %c0_10 = arith.constant 0 : index
    %c0_11 = arith.constant 0 : index
    %43 = vector.load %arg6[%c0_10, %c0_11] : memref<16x32xbf16, #tpu.memory_space<vmem>>, vector<16x8xbf16>
    tpu.vector_store %arg6[%c0_10, %c0_11], %42 {strides = array<i32>} : memref<16x32xbf16, #tpu.memory_space<vmem>>, vector<16x8xbf16>,
    %44 = vector.extract_strided_slice %9 {offsets = [0, 0, 8], sizes = [2, 8, 8], strides = [1, 1, 1]} : vector<2x8x32xbf16> to vector<2x8x8xbf16>
    %45 = vector.extract_strided_slice %12 {offsets = [0, 0, 8], sizes = [2, 8, 8], strides = [1, 1, 1]} : vector<2x8x32xbf16> to vector<2x8x8xbf16>
    %46 = vector.extract_strided_slice %15 {offsets = [0, 0, 8], sizes = [2, 8, 8], strides = [1, 1, 1]} : vector<2x8x32xbf16> to vector<2x8x8xbf16>
    "tpu.trace_start"() <{level = 10 : i32, message = "bqd,bkd->bqk"}> : () -> ()
    %cst_12 = arith.constant dense<0.000000e+00> : vector<2x8x8xf32>
    %47 = tpu.matmul %44, %45, %cst_12 {dimension_numbers = #tpu.dot_dimension_numbers<[2], [2], [1], [1], [0, 0, 0, 1, 1, 1], [0], [0]>} : vector<2x8x8xbf16>, vector<2x8x8xbf16>, vector<2x8x8xf32> -> vector<2x8x8xf32>
    %cst_13 = arith.constant 0xFF800000 : f32
    "tpu.trace_stop"() : () -> ()
    %48 = vector.shape_cast %19 : vector<1x8x8xi1> to vector<1x8x8xi1>
    %49 = vector.broadcast %48 : vector<1x8x8xi1> to vector<2x8x8xi1>
    %50 = vector.broadcast %cst_13 : f32 to vector<2x8x8xf32>
    %51 = arith.select %49, %50, %47 : vector<2x8x8xi1>, vector<2x8x8xf32>
    %cst_14 = arith.constant dense<0xFF800000> : vector<2x8xf32>
    %52 = vector.multi_reduction <maximumf>, %51, %cst_14 [2] : vector<2x8x8xf32> to vector<2x8xf32>
    %53 = vector.shape_cast %52 : vector<2x8xf32> to vector<2x8x1xf32>
    %54 = vector.broadcast %53 : vector<2x8x1xf32> to vector<2x8x8xf32>
    %55 = arith.subf %51, %54 : vector<2x8x8xf32>
    %56 = arith.truncf %55 : vector<2x8x8xf32> to vector<2x8x8xbf16>
    %57 = math.exp %56 : vector<2x8x8xbf16>
    %58 = arith.extf %57 : vector<2x8x8xbf16> to vector<2x8x8xf32>
    %cst_15 = arith.constant dense<0.000000e+00> : vector<2x8xf32>
    %59 = vector.multi_reduction <add>, %58, %cst_15 [2] : vector<2x8x8xf32> to vector<2x8xf32>
    %60 = vector.shape_cast %59 : vector<2x8xf32> to vector<2x8x1xf32>
    "tpu.trace_start"() <{level = 10 : i32, message = "bqk,bkd->bqd"}> : () -> ()
    %cst_16 = arith.constant dense<0.000000e+00> : vector<2x8x8xf32>
    %61 = tpu.matmul %57, %46, %cst_16 {dimension_numbers = #tpu.dot_dimension_numbers<[2], [1], [1], [2], [0, 0, 0, 1, 1, 2], [0], [0]>} : vector<2x8x8xbf16>, vector<2x8x8xbf16>, vector<2x8x8xf32> -> vector<2x8x8xf32>
    "tpu.trace_stop"() : () -> ()
    %62 = tpu.reciprocal %60 {approx = true} : vector<2x8x1xf32> -> vector<2x8x1xf32>
    %63 = vector.broadcast %62 : vector<2x8x1xf32> to vector<2x8x8xf32>
    %64 = arith.mulf %61, %63 : vector<2x8x8xf32>
    %65 = vector.shape_cast %64 : vector<2x8x8xf32> to vector<16x8xf32>
    %66 = arith.truncf %65 : vector<16x8xf32> to vector<16x8xbf16>
    %c0_17 = arith.constant 0 : index
    %c8 = arith.constant 8 : index
    %67 = vector.load %arg6[%c0_17, %c8] : memref<16x32xbf16, #tpu.memory_space<vmem>>, vector<16x8xbf16>
    tpu.vector_store %arg6[%c0_17, %c8], %66 {strides = array<i32>} : memref<16x32xbf16, #tpu.memory_space<vmem>>, vector<16x8xbf16>,
    %68 = vector.extract_strided_slice %9 {offsets = [0, 0, 16], sizes = [2, 8, 8], strides = [1, 1, 1]} : vector<2x8x32xbf16> to vector<2x8x8xbf16>
    %69 = vector.extract_strided_slice %12 {offsets = [0, 0, 16], sizes = [2, 8, 8], strides = [1, 1, 1]} : vector<2x8x32xbf16> to vector<2x8x8xbf16>
    %70 = vector.extract_strided_slice %15 {offsets = [0, 0, 16], sizes = [2, 8, 8], strides = [1, 1, 1]} : vector<2x8x32xbf16> to vector<2x8x8xbf16>
    "tpu.trace_start"() <{level = 10 : i32, message = "bqd,bkd->bqk"}> : () -> ()
    %cst_18 = arith.constant dense<0.000000e+00> : vector<2x8x8xf32>
    %71 = tpu.matmul %68, %69, %cst_18 {dimension_numbers = #tpu.dot_dimension_numbers<[2], [2], [1], [1], [0, 0, 0, 1, 1, 1], [0], [0]>} : vector<2x8x8xbf16>, vector<2x8x8xbf16>, vector<2x8x8xf32> -> vector<2x8x8xf32>
    %cst_19 = arith.constant 0xFF800000 : f32
    "tpu.trace_stop"() : () -> ()
    %72 = vector.shape_cast %19 : vector<1x8x8xi1> to vector<1x8x8xi1>
    %73 = vector.broadcast %72 : vector<1x8x8xi1> to vector<2x8x8xi1>
    %74 = vector.broadcast %cst_19 : f32 to vector<2x8x8xf32>
    %75 = arith.select %73, %74, %71 : vector<2x8x8xi1>, vector<2x8x8xf32>
    %cst_20 = arith.constant dense<0xFF800000> : vector<2x8xf32>
    %76 = vector.multi_reduction <maximumf>, %75, %cst_20 [2] : vector<2x8x8xf32> to vector<2x8xf32>
    %77 = vector.shape_cast %76 : vector<2x8xf32> to vector<2x8x1xf32>
    %78 = vector.broadcast %77 : vector<2x8x1xf32> to vector<2x8x8xf32>
    %79 = arith.subf %75, %78 : vector<2x8x8xf32>
    %80 = arith.truncf %79 : vector<2x8x8xf32> to vector<2x8x8xbf16>
    %81 = math.exp %80 : vector<2x8x8xbf16>
    %82 = arith.extf %81 : vector<2x8x8xbf16> to vector<2x8x8xf32>
    %cst_21 = arith.constant dense<0.000000e+00> : vector<2x8xf32>
    %83 = vector.multi_reduction <add>, %82, %cst_21 [2] : vector<2x8x8xf32> to vector<2x8xf32>
    %84 = vector.shape_cast %83 : vector<2x8xf32> to vector<2x8x1xf32>
    "tpu.trace_start"() <{level = 10 : i32, message = "bqk,bkd->bqd"}> : () -> ()
    %cst_22 = arith.constant dense<0.000000e+00> : vector<2x8x8xf32>
    %85 = tpu.matmul %81, %70, %cst_22 {dimension_numbers = #tpu.dot_dimension_numbers<[2], [1], [1], [2], [0, 0, 0, 1, 1, 2], [0], [0]>} : vector<2x8x8xbf16>, vector<2x8x8xbf16>, vector<2x8x8xf32> -> vector<2x8x8xf32>
    "tpu.trace_stop"() : () -> ()
    %86 = tpu.reciprocal %84 {approx = true} : vector<2x8x1xf32> -> vector<2x8x1xf32>
    %87 = vector.broadcast %86 : vector<2x8x1xf32> to vector<2x8x8xf32>
    %88 = arith.mulf %85, %87 : vector<2x8x8xf32>
    %89 = vector.shape_cast %88 : vector<2x8x8xf32> to vector<16x8xf32>
    %90 = arith.truncf %89 : vector<16x8xf32> to vector<16x8xbf16>
    %c0_23 = arith.constant 0 : index
    %c16 = arith.constant 16 : index
    %91 = vector.load %arg6[%c0_23, %c16] : memref<16x32xbf16, #tpu.memory_space<vmem>>, vector<16x8xbf16>
    tpu.vector_store %arg6[%c0_23, %c16], %90 {strides = array<i32>} : memref<16x32xbf16, #tpu.memory_space<vmem>>, vector<16x8xbf16>,
    %92 = vector.extract_strided_slice %9 {offsets = [0, 0, 24], sizes = [2, 8, 8], strides = [1, 1, 1]} : vector<2x8x32xbf16> to vector<2x8x8xbf16>
    %93 = vector.extract_strided_slice %12 {offsets = [0, 0, 24], sizes = [2, 8, 8], strides = [1, 1, 1]} : vector<2x8x32xbf16> to vector<2x8x8xbf16>
    %94 = vector.extract_strided_slice %15 {offsets = [0, 0, 24], sizes = [2, 8, 8], strides = [1, 1, 1]} : vector<2x8x32xbf16> to vector<2x8x8xbf16>
    "tpu.trace_start"() <{level = 10 : i32, message = "bqd,bkd->bqk"}> : () -> ()
    %cst_24 = arith.constant dense<0.000000e+00> : vector<2x8x8xf32>
    %95 = tpu.matmul %92, %93, %cst_24 {dimension_numbers = #tpu.dot_dimension_numbers<[2], [2], [1], [1], [0, 0, 0, 1, 1, 1], [0], [0]>} : vector<2x8x8xbf16>, vector<2x8x8xbf16>, vector<2x8x8xf32> -> vector<2x8x8xf32>
    %cst_25 = arith.constant 0xFF800000 : f32
    "tpu.trace_stop"() : () -> ()
    %96 = vector.shape_cast %19 : vector<1x8x8xi1> to vector<1x8x8xi1>
    %97 = vector.broadcast %96 : vector<1x8x8xi1> to vector<2x8x8xi1>
    %98 = vector.broadcast %cst_25 : f32 to vector<2x8x8xf32>
    %99 = arith.select %97, %98, %95 : vector<2x8x8xi1>, vector<2x8x8xf32>
    %cst_26 = arith.constant dense<0xFF800000> : vector<2x8xf32>
    %100 = vector.multi_reduction <maximumf>, %99, %cst_26 [2] : vector<2x8x8xf32> to vector<2x8xf32>
    %101 = vector.shape_cast %100 : vector<2x8xf32> to vector<2x8x1xf32>
    %102 = vector.broadcast %101 : vector<2x8x1xf32> to vector<2x8x8xf32>
    %103 = arith.subf %99, %102 : vector<2x8x8xf32>
    %104 = arith.truncf %103 : vector<2x8x8xf32> to vector<2x8x8xbf16>
    %105 = math.exp %104 : vector<2x8x8xbf16>
    %106 = arith.extf %105 : vector<2x8x8xbf16> to vector<2x8x8xf32>
    %cst_27 = arith.constant dense<0.000000e+00> : vector<2x8xf32>
    %107 = vector.multi_reduction <add>, %106, %cst_27 [2] : vector<2x8x8xf32> to vector<2x8xf32>
    %108 = vector.shape_cast %107 : vector<2x8xf32> to vector<2x8x1xf32>
    "tpu.trace_start"() <{level = 10 : i32, message = "bqk,bkd->bqd"}> : () -> ()
    %cst_28 = arith.constant dense<0.000000e+00> : vector<2x8x8xf32>
    %109 = tpu.matmul %105, %94, %cst_28 {dimension_numbers = #tpu.dot_dimension_numbers<[2], [1], [1], [2], [0, 0, 0, 1, 1, 2], [0], [0]>} : vector<2x8x8xbf16>, vector<2x8x8xbf16>, vector<2x8x8xf32> -> vector<2x8x8xf32>
    "tpu.trace_stop"() : () -> ()
    %110 = tpu.reciprocal %108 {approx = true} : vector<2x8x1xf32> -> vector<2x8x1xf32>
    %111 = vector.broadcast %110 : vector<2x8x1xf32> to vector<2x8x8xf32>
    %112 = arith.mulf %109, %111 : vector<2x8x8xf32>
    %113 = vector.shape_cast %112 : vector<2x8x8xf32> to vector<16x8xf32>
    %114 = arith.truncf %113 : vector<16x8xf32> to vector<16x8xbf16>
    %c0_29 = arith.constant 0 : index
    %c24 = arith.constant 24 : index
    %115 = vector.load %arg6[%c0_29, %c24] : memref<16x32xbf16, #tpu.memory_space<vmem>>, vector<16x8xbf16>
    tpu.vector_store %arg6[%c0_29, %c24], %114 {strides = array<i32>} : memref<16x32xbf16, #tpu.memory_space<vmem>>, vector<16x8xbf16>,
    %c0_30 = arith.constant 0 : index
    %c0_31 = arith.constant 0 : index
    %116 = vector.load %arg6[%c0_30, %c0_31] : memref<16x32xbf16, #tpu.memory_space<vmem>>, vector<16x32xbf16>
    %c0_32 = arith.constant 0 : index
    %c0_33 = arith.constant 0 : index
    %117 = vector.load %arg3[%c0_32, %c0_33] : memref<32x32xbf16, #tpu.memory_space<vmem>>, vector<32x32xbf16>
    %cst_34 = arith.constant dense<0.000000e+00> : vector<16x32xf32>
    %118 = tpu.matmul %116, %117, %cst_34 {dimension_numbers = #tpu.dot_dimension_numbers<[1], [0], [0], [1], [0, 0, 1, 1], [], []>} : vector<16x32xbf16>, vector<32x32xbf16>, vector<16x32xf32> -> vector<16x32xf32>
    %c0_35 = arith.constant 0 : index
    %c0_36 = arith.constant 0 : index
    %119 = vector.load %arg4[%c0_35, %c0_36] : memref<1x32xf32, #tpu.memory_space<vmem>>, vector<1x32xf32>
    %120 = vector.broadcast %119 : vector<1x32xf32> to vector<16x32xf32>
    %121 = arith.addf %118, %120 : vector<16x32xf32>
    %122 = vector.shape_cast %121 : vector<16x32xf32> to vector<2x8x32xf32>
    %c0_37 = arith.constant 0 : index
    %c0_38 = arith.constant 0 : index
    %c0_39 = arith.constant 0 : index
    %123 = vector.load %arg5[%c0_37, %c0_38, %c0_39] : memref<2x8x32xf32, #tpu.memory_space<vmem>>, vector<2x8x32xf32>
    tpu.vector_store %arg5[%c0_37, %c0_38, %c0_39], %122 {strides = array<i32>} : memref<2x8x32xf32, #tpu.memory_space<vmem>>, vector<2x8x32xf32>,
    return
  }
  func.func @transform_0(%arg0: i32) -> (i32, i32, i32) {
    %c0_i32 = arith.constant 0 : i32
    %c0_i32_0 = arith.constant 0 : i32
    %c0_i32_1 = arith.constant 0 : i32
    return %arg0, %c0_i32, %c0_i32_0 : i32, i32, i32
  }
  func.func @transform_1(%arg0: i32) -> (i32, i32) {
    %c0_i32 = arith.constant 0 : i32
    %c0_i32_0 = arith.constant 0 : i32
    %c0_i32_1 = arith.constant 0 : i32
    return %c0_i32, %c0_i32_0 : i32, i32
  }
  func.func @transform_2(%arg0: i32) -> (i32, i32) {
    %c0_i32 = arith.constant 0 : i32
    %c0_i32_0 = arith.constant 0 : i32
    %c0_i32_1 = arith.constant 0 : i32
    return %c0_i32, %c0_i32_0 : i32, i32
  }
  func.func @transform_3(%arg0: i32) -> (i32, i32) {
    %c0_i32 = arith.constant 0 : i32
    %c0_i32_0 = arith.constant 0 : i32
    %c0_i32_1 = arith.constant 0 : i32
    return %c0_i32, %c0_i32_0 : i32, i32
  }
  func.func @transform_4(%arg0: i32) -> (i32, i32, i32) {
    %c0_i32 = arith.constant 0 : i32
    %c0_i32_0 = arith.constant 0 : i32
    %c0_i32_1 = arith.constant 0 : i32
    return %arg0, %c0_i32, %c0_i32_0 : i32, i32, i32
  }
}

</mosaic_0001>

<llo_original>
// kernel: tpu_custom_call.1
$region0: #{tpu_custom_call.1}
  #allocation0 [shape = 'u32[]', space=smem, size = 0x4, offset = 0x4, fixed_abs, tag = 'smem constant byte address 0x4 - core index']
  #allocation1 [shape = 'u32[144,128]{1,0:T(1,128)}', space=vmem, size = 0x12000, scoped, tag = 'internal scratch']
  #allocation2 [shape = 'bf16[16,32]{1,0:T(16,128)(2,1)}', space=vmem, size = 0x1000, scoped, tag = 'scratch operand']
  %s0 = inlined_call_operand.hbm [shape: f32[2,8,32], index: 0, kind: input, shape index: {}]
  %s1 = inlined_call_operand.hbm [shape: bf16[32,96], index: 1, kind: input, shape index: {}]
  %s2 = inlined_call_operand.hbm [shape: bf16[32,32], index: 2, kind: input, shape index: {}]
  %s3 = inlined_call_operand.vmem [shape: f32[1,32], index: 3, kind: input, shape index: {}]
  %s4 = inlined_call_operand.hbm [shape: f32[2,8,32], index: 4, kind: output, shape index: {}]
  %s5 = sld [smem:[#allocation0]]
  $region38: #{tpu_custom_call.1} parent=0
    _
  %s7 = ssub.s32 1, %s5
  %s8 = scalar_select 0, %s7, %s5
  $region1: #{tpu_custom_call.1} parent=0
    #allocation3 [shape = 'u8[8192]{0}', space=vmem, size = 0x2000, scoped, tag = 'input window, operand 0, single buffered']
    #allocation4 [shape = 's32[1]{0}', space=sflag, size = 0x4, scoped, tag = 'scoped memory for tpu_custom_call.1']
    #allocation5 [shape = 's32[1]{0}', space=sflag, size = 0x4, scoped, tag = 'scoped memory for tpu_custom_call.1']
    #allocation6 [shape = 'u8[8192]{0}', space=vmem, size = 0x2000, scoped, tag = 'input window, operand 1, single buffered']
    #allocation7 [shape = 's32[1]{0}', space=sflag, size = 0x4, scoped, tag = 'scoped memory for tpu_custom_call.1']
    #allocation8 [shape = 'u8[8192]{0}', space=vmem, size = 0x2000, scoped, tag = 'input window, operand 2, single buffered']
    #allocation9 [shape = 'u8[8192]{0}', space=vmem, size = 0x2000, scoped, tag = 'output window, operand 0, single buffered']
    %9 = vsyncpa [#allocation4], 0
    %10 = vsyncpa [#allocation7], 0
    %11 = vsyncpa [#allocation5], 0
    // Predicated region
    $region2: #{tpu_custom_call.1} parent=1 // pred_check
      _
    $region3: #{tpu_custom_call.1} parent=1 // pred_check_branch
      %13 = sbr.rel (0) target = $region5
    $region4: #{tpu_custom_call.1} parent=1 // pred_region
      %s15 = ssub.s32 256, 256
      %16 = vsyncadd [#allocation4], %s15
      %s17 = sshll.u32 [#allocation3], 4
      %s18 = int_to_ptr.vmem [resolvable:$true] %s17
      %23 = dma.hbm_to_vmem [thread:$0]  %s0, 256, %s18, [#allocation4], 128, 128, 8
    $region5: #{tpu_custom_call.1} parent=1 // pred_fallthru
      _
    // Predicated region
    $region6: #{tpu_custom_call.1} parent=1 // pred_check
      _
    $region7: #{tpu_custom_call.1} parent=1 // pred_check_branch
      %25 = sbr.rel (0) target = $region9
    $region8: #{tpu_custom_call.1} parent=1 // pred_region
      %s27 = ssub.s32 256, 256
      %28 = vsyncadd [#allocation7], %s27
      %s29 = sshll.u32 [#allocation6], 4
      %s30 = int_to_ptr.vmem [resolvable:$true] %s29
      %35 = dma.hbm_to_vmem [thread:$0]  %s1, 256, %s30, [#allocation7], 64, 64, 4
    $region9: #{tpu_custom_call.1} parent=1 // pred_fallthru
      _
    // Predicated region
    $region10: #{tpu_custom_call.1} parent=1 // pred_check
      _
    $region11: #{tpu_custom_call.1} parent=1 // pred_check_branch
      %37 = sbr.rel (0) target = $region13
    $region12: #{tpu_custom_call.1} parent=1 // pred_region
      %s39 = ssub.s32 256, 256
      %40 = vsyncadd [#allocation7], %s39
      %s41 = sshll.u32 [#allocation8], 4
      %s42 = int_to_ptr.vmem [resolvable:$true] %s41
      %47 = dma.hbm_to_vmem [thread:$0]  %s2, 256, %s42, [#allocation7], 64, 64, 4
    $region13: #{tpu_custom_call.1} parent=1 // pred_fallthru
      _
    // Predicated region
    $region14: #{tpu_custom_call.1} parent=1 // pred_check
      _
    $region15: #{tpu_custom_call.1} parent=1 // pred_check_branch
      %49 = sbr.rel (0) target = $region17
    $region16: #{tpu_custom_call.1} parent=1 // pred_region
      _
    $region17: #{tpu_custom_call.1} parent=1 // pred_fallthru
      _
    // Predicated region
    $region18: #{tpu_custom_call.1} parent=1 // pred_check
      _
    $region19: #{tpu_custom_call.1} parent=1 // pred_check_branch
      %51 = sbr.rel (0) target = $region21
    $region20: #{tpu_custom_call.1} parent=1 // pred_region
      %52 = dma.done [#allocation4], 256
    $region21: #{tpu_custom_call.1} parent=1 // pred_fallthru
      _
    // Predicated region
    $region22: #{tpu_custom_call.1} parent=1 // pred_check
      _
    $region23: #{tpu_custom_call.1} parent=1 // pred_check_branch
      %54 = sbr.rel (0) target = $region25
    $region24: #{tpu_custom_call.1} parent=1 // pred_region
      %55 = dma.done [#allocation7], 256
    $region25: #{tpu_custom_call.1} parent=1 // pred_fallthru
      _
    // Predicated region
    $region26: #{tpu_custom_call.1} parent=1 // pred_check
      _
    $region27: #{tpu_custom_call.1} parent=1 // pred_check_branch
      %57 = sbr.rel (0) target = $region29
    $region28: #{tpu_custom_call.1} parent=1 // pred_region
      %58 = dma.done [#allocation7], 256
    $region29: #{tpu_custom_call.1} parent=1 // pred_fallthru
      _
    %v60 = vld [vmem:[#allocation3] sm:$0xff]
    %v61 = vld [vmem:[#allocation3 + $0x8] sm:$0xff]
    %v62 = vpack.c.bf16 %v61, %v60
    %v63 = vld [vmem:[#allocation6] sm:$0xf]
    %v64 = vld [vmem:[#allocation6 + $0x4] sm:$0xf]
    %v65 = vld [vmem:[#allocation6 + $0x8] sm:$0xf]
    %v66 = vld [vmem:[#allocation6 + $0xc] sm:$0xf]
    %v71 = vunpack.c.l.b16 %v63
    %v72 = vunpack.c.l.b16 %v64
    %v73 = vunpack.c.l.b16 %v65
    %v74 = vunpack.c.l.b16 %v66
    %v75 = vpack.c.b16 %v72, %v71
    %v76 = vpack.c.b16 %v74, %v73
    %vm79 = vcmask 261120
    %v81 = vsel %vm79, %v62, 0
    %83 = vmatprep.subr.bf16.mxu0 0
    %84 = vmatpush1.bf16.msra.mxu0 %v75
    %85 = vmatprep.subr.bf16.mxu0 0
    %86 = vmatpush1.bf16.msra.mxu0 %v76
    %87 = vmatprep.subr.bf16.mxu0 0
    %88 = vmatpush1.bf16.msra.mxu0 0
    %89 = vmatprep.subr.bf16.mxu0 0
    %90 = vmatpush1.bf16.msra.mxu0 0
    %91 = vmatprep.subr.bf16.mxu0 0
    %92 = vmatpush1.bf16.msra.mxu0 0
    %93 = vmatprep.subr.bf16.mxu0 0
    %94 = vmatpush1.bf16.msra.mxu0 0
    %95 = vmatprep.subr.bf16.mxu0 0
    %96 = vmatpush1.bf16.msra.mxu0 0
    %97 = vmatprep.subr.bf16.mxu0 0
    %98 = vmatpush1.bf16.msra.mxu0 0
    %99 = vmatprep.subr.bf16.mxu0 0
    %100 = vmatpush1.bf16.msra.mxu0 0
    %101 = vmatprep.subr.bf16.mxu0 0
    %102 = vmatpush1.bf16.msra.mxu0 0
    %103 = vmatprep.subr.bf16.mxu0 0
    %104 = vmatpush1.bf16.msra.mxu0 0
    %105 = vmatprep.subr.bf16.mxu0 0
    %106 = vmatpush1.bf16.msra.mxu0 0
    %107 = vmatprep.subr.bf16.mxu0 0
    %108 = vmatpush1.bf16.msra.mxu0 0
    %109 = vmatprep.subr.bf16.mxu0 0
    %110 = vmatpush1.bf16.msra.mxu0 0
    %111 = vmatprep.subr.bf16.mxu0 0
    %112 = vmatpush1.bf16.msra.mxu0 0
    %113 = vmatprep.subr.bf16.mxu0 0
    %114 = vmatpush1.bf16.msra.mxu0 0
    %115 = vmatprep.mubr.bf16.mxu0 0
    %116 = vmatmul.mubr.bf16.gmra.mrb[0].mxu0 %v81
    %v117 = vpop.f32.mrb[0].mxu0
    %v118 = vadd.f32 0.0, %v117
    %v119 = vpop.f32.mrb[0].mxu0
    %v120 = vpop.f32.mrb[0].mxu0
    %v121 = vadd.f32 0.0, %v120
    %v122 = vpop.f32.mrb[0].mxu0
    %123 = vdwg.mxu0
    %v124 = vmul.f32 %v118, 0.35355338
    %v125 = vmul.f32 %v121, 0.35355338
    %v126 = vpack.c.bf16 %v124, %v124
    %v127 = vpack.c.bf16 %v125, %v125
    %v128 = vpack.c.bf16 %v118, %v118
    %v129 = vpack.c.bf16 %v121, %v121
    %v130 = vlaneseq
    %v131 = vshrl.u32 %v130, 7
    %v132 = vlaneseq
    %v133 = vand.u32 %v132, 127
    %vm134 = vcmp.gt.s32.totalorder %v133, %v131
    %136 = vrot.lane.b32.xlu0 %v128, 96
    %v137 = vpop.permute.xlu0 %136
    %vm138 = vcmask 64512
    %v140 = vsel %vm138, %v126, 0
    %v143 = vsel %vm138, %v137, 0
    %145 = vmatprep.subr.bf16.mxu0 0
    %146 = vmatpush1.bf16.xpose.msra.mxu0 %v143
    %147 = vmatprep.subr.bf16.mxu0 0
    %148 = vmatpush1.bf16.xpose.msra.mxu0 0
    %149 = vmatprep.subr.bf16.mxu0 0
    %150 = vmatpush1.bf16.xpose.msra.mxu0 0
    %151 = vmatprep.subr.bf16.mxu0 0
    %152 = vmatpush1.bf16.xpose.msra.mxu0 0
    %153 = vmatprep.subr.bf16.mxu0 0
    %154 = vmatpush1.bf16.xpose.msra.mxu0 0
    %155 = vmatprep.subr.bf16.mxu0 0
    %156 = vmatpush1.bf16.xpose.msra.mxu0 0
    %157 = vmatprep.subr.bf16.mxu0 0
    %158 = vmatpush1.bf16.xpose.msra.mxu0 0
    %159 = vmatprep.subr.bf16.mxu0 0
    %160 = vmatpush1.bf16.xpose.msra.mxu0 0
    %161 = vmatprep.subr.bf16.mxu0 0
    %162 = vmatpush1.bf16.xpose.msra.mxu0 0
    %163 = vmatprep.subr.bf16.mxu0 0
    %164 = vmatpush1.bf16.xpose.msra.mxu0 0
    %165 = vmatprep.subr.bf16.mxu0 0
    %166 = vmatpush1.bf16.xpose.msra.mxu0 0
    %167 = vmatprep.subr.bf16.mxu0 0
    %168 = vmatpush1.bf16.xpose.msra.mxu0 0
    %169 = vmatprep.subr.bf16.mxu0 0
    %170 = vmatpush1.bf16.xpose.msra.mxu0 0
    %171 = vmatprep.subr.bf16.mxu0 0
    %172 = vmatpush1.bf16.xpose.msra.mxu0 0
    %173 = vmatprep.subr.bf16.mxu0 0
    %174 = vmatpush1.bf16.xpose.msra.mxu0 0
    %175 = vmatprep.subr.bf16.mxu0 0
    %176 = vmatpush1.bf16.xpose.msra.mxu0 0
    %177 = vmatprep.mubr.bf16.mxu0 0
    %178 = vmatmul.mubr.bf16.gmra.mrb[0].mxu0 %v140
    %v179 = vpop.f32.mrb[0].mxu0
    %v180 = vadd.f32 0.0, %v179
    %v181 = vpop.f32.mrb[0].mxu0
    %v182 = vpop.f32.mrb[0].mxu0
    %v183 = vpop.f32.mrb[0].mxu0
    %184 = vdwg.mxu0
    %186 = vrot.lane.b32.xlu0 %v129, 96
    %v187 = vpop.permute.xlu0 %186
    %v189 = vsel %vm138, %v127, 0
    %v192 = vsel %vm138, %v187, 0
    %194 = vmatprep.subr.bf16.mxu0 0
    %195 = vmatpush1.bf16.xpose.msra.mxu0 %v192
    %196 = vmatprep.subr.bf16.mxu0 0
    %197 = vmatpush1.bf16.xpose.msra.mxu0 0
    %198 = vmatprep.subr.bf16.mxu0 0
    %199 = vmatpush1.bf16.xpose.msra.mxu0 0
    %200 = vmatprep.subr.bf16.mxu0 0
    %201 = vmatpush1.bf16.xpose.msra.mxu0 0
    %202 = vmatprep.subr.bf16.mxu0 0
    %203 = vmatpush1.bf16.xpose.msra.mxu0 0
    %204 = vmatprep.subr.bf16.mxu0 0
    %205 = vmatpush1.bf16.xpose.msra.mxu0 0
    %206 = vmatprep.subr.bf16.mxu0 0
    %207 = vmatpush1.bf16.xpose.msra.mxu0 0
    %208 = vmatprep.subr.bf16.mxu0 0
    %209 = vmatpush1.bf16.xpose.msra.mxu0 0
    %210 = vmatprep.subr.bf16.mxu0 0
    %211 = vmatpush1.bf16.xpose.msra.mxu0 0
    %212 = vmatprep.subr.bf16.mxu0 0
    %213 = vmatpush1.bf16.xpose.msra.mxu0 0
    %214 = vmatprep.subr.bf16.mxu0 0
    %215 = vmatpush1.bf16.xpose.msra.mxu0 0
    %216 = vmatprep.subr.bf16.mxu0 0
    %217 = vmatpush1.bf16.xpose.msra.mxu0 0
    %218 = vmatprep.subr.bf16.mxu0 0
    %219 = vmatpush1.bf16.xpose.msra.mxu0 0
    %220 = vmatprep.subr.bf16.mxu0 0
    %221 = vmatpush1.bf16.xpose.msra.mxu0 0
    %222 = vmatprep.subr.bf16.mxu0 0
    %223 = vmatpush1.bf16.xpose.msra.mxu0 0
    %224 = vmatprep.subr.bf16.mxu0 0
    %225 = vmatpush1.bf16.xpose.msra.mxu0 0
    %226 = vmatprep.mubr.bf16.mxu0 0
    %227 = vmatmul.mubr.bf16.gmra.mrb[0].mxu0 %v189
    %v228 = vpop.f32.mrb[0].mxu0
    %v229 = vadd.f32 0.0, %v228
    %v230 = vpop.f32.mrb[0].mxu0
    %v231 = vpop.f32.mrb[0].mxu0
    %v232 = vpop.f32.mrb[0].mxu0
    %233 = vdwg.mxu0
    %v234 = vsel %vm134, 1, 0
    %vm235 = vcmp.eq.s32.totalorder %v234, 1
    %v236 = vsel %vm235, -inf, %v180
    %v237 = vsel %vm235, -inf, %v229
    %v238 = vsel %vm138, %v236, -inf
    %239 = vmax.xlane.f32.xlu0 %v238
    %v240 = vpop.xlane.xlu0 %239
    %v241 = vsel %vm138, %v237, -inf
    %242 = vmax.xlane.f32.xlu0 %v241
    %v243 = vpop.xlane.xlu0 %242
    %v244 = vsub.f32 %v236, %v240
    %v245 = vsub.f32 %v237, %v243
    %v246 = vpack.c.bf16 %v244, %v244
    %v247 = vpack.c.bf16 %v245, %v245
    %v249 = vmul.bf16 %v246, 1069105081
    %v250 = vpow.bf16.pop %v249
    %v252 = vmul.bf16 %v247, 1069105081
    %v253 = vpow.bf16.pop %v252
    %v254 = vunpack.c.l.bf16 %v250
    %v255 = vunpack.c.l.bf16 %v253
    %v256 = vsel %vm138, %v254, 0.0
    %257 = vadd.xlane.f32.xlu0 %v256
    %v258 = vpop.xlane.xlu0 %257
    %v259 = vsel %vm138, %v255, 0.0
    %260 = vadd.xlane.f32.xlu0 %v259
    %v261 = vpop.xlane.xlu0 %260
    %262 = vrot.lane.b32.xlu0 %v128, 64
    %v263 = vpop.permute.xlu0 %262
    %v265 = vsel %vm138, %v250, 0
    %vm267 = vcmask 1043456
    %v269 = vsel %vm267, %v263, 0
    %271 = vmatprep.subr.bf16.mxu0 0
    %272 = vmatpush1.bf16.msra.mxu0 %v269
    %273 = vmatprep.subr.bf16.mxu0 0
    %274 = vmatpush1.bf16.msra.mxu0 0
    %275 = vmatprep.subr.bf16.mxu0 0
    %276 = vmatpush1.bf16.msra.mxu0 0
    %277 = vmatprep.subr.bf16.mxu0 0
    %278 = vmatpush1.bf16.msra.mxu0 0
    %279 = vmatprep.subr.bf16.mxu0 0
    %280 = vmatpush1.bf16.msra.mxu0 0
    %281 = vmatprep.subr.bf16.mxu0 0
    %282 = vmatpush1.bf16.msra.mxu0 0
    %283 = vmatprep.subr.bf16.mxu0 0
    %284 = vmatpush1.bf16.msra.mxu0 0
    %285 = vmatprep.subr.bf16.mxu0 0
    %286 = vmatpush1.bf16.msra.mxu0 0
    %287 = vmatprep.subr.bf16.mxu0 0
    %288 = vmatpush1.bf16.msra.mxu0 0
    %289 = vmatprep.subr.bf16.mxu0 0
    %290 = vmatpush1.bf16.msra.mxu0 0
    %291 = vmatprep.subr.bf16.mxu0 0
    %292 = vmatpush1.bf16.msra.mxu0 0
    %293 = vmatprep.subr.bf16.mxu0 0
    %294 = vmatpush1.bf16.msra.mxu0 0
    %295 = vmatprep.subr.bf16.mxu0 0
    %296 = vmatpush1.bf16.msra.mxu0 0
    %297 = vmatprep.subr.bf16.mxu0 0
    %298 = vmatpush1.bf16.msra.mxu0 0
    %299 = vmatprep.subr.bf16.mxu0 0
    %300 = vmatpush1.bf16.msra.mxu0 0
    %301 = vmatprep.subr.bf16.mxu0 0
    %302 = vmatpush1.bf16.msra.mxu0 0
    %303 = vmatprep.mubr.bf16.mxu0 0
    %304 = vmatmul.mubr.bf16.gmra.mrb[0].mxu0 %v265
    %v305 = vpop.f32.mrb[0].mxu0
    %v306 = vadd.f32 0.0, %v305
    %v307 = vpop.f32.mrb[0].mxu0
    %v308 = vpop.f32.mrb[0].mxu0
    %v309 = vpop.f32.mrb[0].mxu0
    %310 = vdwg.mxu0
    %311 = vrot.lane.b32.xlu0 %v129, 64
    %v312 = vpop.permute.xlu0 %311
    %v314 = vsel %vm138, %v253, 0
    %v317 = vsel %vm267, %v312, 0
    %319 = vmatprep.subr.bf16.mxu0 0
    %320 = vmatpush1.bf16.msra.mxu0 %v317
    %321 = vmatprep.subr.bf16.mxu0 0
    %322 = vmatpush1.bf16.msra.mxu0 0
    %323 = vmatprep.subr.bf16.mxu0 0
    %324 = vmatpush1.bf16.msra.mxu0 0
    %325 = vmatprep.subr.bf16.mxu0 0
    %326 = vmatpush1.bf16.msra.mxu0 0
    %327 = vmatprep.subr.bf16.mxu0 0
    %328 = vmatpush1.bf16.msra.mxu0 0
    %329 = vmatprep.subr.bf16.mxu0 0
    %330 = vmatpush1.bf16.msra.mxu0 0
    %331 = vmatprep.subr.bf16.mxu0 0
    %332 = vmatpush1.bf16.msra.mxu0 0
    %333 = vmatprep.subr.bf16.mxu0 0
    %334 = vmatpush1.bf16.msra.mxu0 0
    %335 = vmatprep.subr.bf16.mxu0 0
    %336 = vmatpush1.bf16.msra.mxu0 0
    %337 = vmatprep.subr.bf16.mxu0 0
    %338 = vmatpush1.bf16.msra.mxu0 0
    %339 = vmatprep.subr.bf16.mxu0 0
    %340 = vmatpush1.bf16.msra.mxu0 0
    %341 = vmatprep.subr.bf16.mxu0 0
    %342 = vmatpush1.bf16.msra.mxu0 0
    %343 = vmatprep.subr.bf16.mxu0 0
    %344 = vmatpush1.bf16.msra.mxu0 0
    %345 = vmatprep.subr.bf16.mxu0 0
    %346 = vmatpush1.bf16.msra.mxu0 0
    %347 = vmatprep.subr.bf16.mxu0 0
    %348 = vmatpush1.bf16.msra.mxu0 0
    %349 = vmatprep.subr.bf16.mxu0 0
    %350 = vmatpush1.bf16.msra.mxu0 0
    %351 = vmatprep.mubr.bf16.mxu0 0
    %352 = vmatmul.mubr.bf16.gmra.mrb[0].mxu0 %v314
    %v353 = vpop.f32.mrb[0].mxu0
    %v354 = vadd.f32 0.0, %v353
    %v355 = vpop.f32.mrb[0].mxu0
    %v356 = vpop.f32.mrb[0].mxu0
    %v357 = vpop.f32.mrb[0].mxu0
    %358 = vdwg.mxu0
    %v359 = vrcp.pop %v258
    %v360 = vrcp.pop %v261
    %v361 = vmul.f32 %v306, %v359
    %v362 = vmul.f32 %v354, %v360
    %v363 = vpack.c.bf16 %v362, %v361
    %364 = vst.msk [vmem:[#allocation2] sm:$0xff] %vm138, %v363
    %366 = vrot.lane.b32.xlu0 %v126, 120
    %v367 = vpop.permute.xlu0 %366
    %368 = vrot.lane.b32.xlu0 %v128, 88
    %v369 = vpop.permute.xlu0 %368
    %v371 = vsel %vm138, %v367, 0
    %v374 = vsel %vm138, %v369, 0
    %376 = vmatprep.subr.bf16.mxu0 0
    %377 = vmatpush1.bf16.xpose.msra.mxu0 %v374
    %378 = vmatprep.subr.bf16.mxu0 0
    %379 = vmatpush1.bf16.xpose.msra.mxu0 0
    %380 = vmatprep.subr.bf16.mxu0 0
    %381 = vmatpush1.bf16.xpose.msra.mxu0 0
    %382 = vmatprep.subr.bf16.mxu0 0
    %383 = vmatpush1.bf16.xpose.msra.mxu0 0
    %384 = vmatprep.subr.bf16.mxu0 0
    %385 = vmatpush1.bf16.xpose.msra.mxu0 0
    %386 = vmatprep.subr.bf16.mxu0 0
    %387 = vmatpush1.bf16.xpose.msra.mxu0 0
    %388 = vmatprep.subr.bf16.mxu0 0
    %389 = vmatpush1.bf16.xpose.msra.mxu0 0
    %390 = vmatprep.subr.bf16.mxu0 0
    %391 = vmatpush1.bf16.xpose.msra.mxu0 0
    %392 = vmatprep.subr.bf16.mxu0 0
    %393 = vmatpush1.bf16.xpose.msra.mxu0 0
    %394 = vmatprep.subr.bf16.mxu0 0
    %395 = vmatpush1.bf16.xpose.msra.mxu0 0
    %396 = vmatprep.subr.bf16.mxu0 0
    %397 = vmatpush1.bf16.xpose.msra.mxu0 0
    %398 = vmatprep.subr.bf16.mxu0 0
    %399 = vmatpush1.bf16.xpose.msra.mxu0 0
    %400 = vmatprep.subr.bf16.mxu0 0
    %401 = vmatpush1.bf16.xpose.msra.mxu0 0
    %402 = vmatprep.subr.bf16.mxu0 0
    %403 = vmatpush1.bf16.xpose.msra.mxu0 0
    %404 = vmatprep.subr.bf16.mxu0 0
    %405 = vmatpush1.bf16.xpose.msra.mxu0 0
    %406 = vmatprep.subr.bf16.mxu0 0
    %407 = vmatpush1.bf16.xpose.msra.mxu0 0
    %408 = vmatprep.mubr.bf16.mxu0 0
    %409 = vmatmul.mubr.bf16.gmra.mrb[0].mxu0 %v371
    %v410 = vpop.f32.mrb[0].mxu0
    %v411 = vadd.f32 0.0, %v410
    %v412 = vpop.f32.mrb[0].mxu0
    %v413 = vpop.f32.mrb[0].mxu0
    %v414 = vpop.f32.mrb[0].mxu0
    %415 = vdwg.mxu0
    %417 = vrot.lane.b32.xlu0 %v127, 120
    %v418 = vpop.permute.xlu0 %417
    %419 = vrot.lane.b32.xlu0 %v129, 88
    %v420 = vpop.permute.xlu0 %419
    %v422 = vsel %vm138, %v418, 0
    %v425 = vsel %vm138, %v420, 0
    %427 = vmatprep.subr.bf16.mxu0 0
    %428 = vmatpush1.bf16.xpose.msra.mxu0 %v425
    %429 = vmatprep.subr.bf16.mxu0 0
    %430 = vmatpush1.bf16.xpose.msra.mxu0 0
    %431 = vmatprep.subr.bf16.mxu0 0
    %432 = vmatpush1.bf16.xpose.msra.mxu0 0
    %433 = vmatprep.subr.bf16.mxu0 0
    %434 = vmatpush1.bf16.xpose.msra.mxu0 0
    %435 = vmatprep.subr.bf16.mxu0 0
    %436 = vmatpush1.bf16.xpose.msra.mxu0 0
    %437 = vmatprep.subr.bf16.mxu0 0
    %438 = vmatpush1.bf16.xpose.msra.mxu0 0
    %439 = vmatprep.subr.bf16.mxu0 0
    %440 = vmatpush1.bf16.xpose.msra.mxu0 0
    %441 = vmatprep.subr.bf16.mxu0 0
    %442 = vmatpush1.bf16.xpose.msra.mxu0 0
    %443 = vmatprep.subr.bf16.mxu0 0
    %444 = vmatpush1.bf16.xpose.msra.mxu0 0
    %445 = vmatprep.subr.bf16.mxu0 0
    %446 = vmatpush1.bf16.xpose.msra.mxu0 0
    %447 = vmatprep.subr.bf16.mxu0 0
    %448 = vmatpush1.bf16.xpose.msra.mxu0 0
    %449 = vmatprep.subr.bf16.mxu0 0
    %450 = vmatpush1.bf16.xpose.msra.mxu0 0
    %451 = vmatprep.subr.bf16.mxu0 0
    %452 = vmatpush1.bf16.xpose.msra.mxu0 0
    %453 = vmatprep.subr.bf16.mxu0 0
    %454 = vmatpush1.bf16.xpose.msra.mxu0 0
    %455 = vmatprep.subr.bf16.mxu0 0
    %456 = vmatpush1.bf16.xpose.msra.mxu0 0
    %457 = vmatprep.subr.bf16.mxu0 0
    %458 = vmatpush1.bf16.xpose.msra.mxu0 0
    %459 = vmatprep.mubr.bf16.mxu0 0
    %460 = vmatmul.mubr.bf16.gmra.mrb[0].mxu0 %v422
    %v461 = vpop.f32.mrb[0].mxu0
    %v462 = vadd.f32 0.0, %v461
    %v463 = vpop.f32.mrb[0].mxu0
    %v464 = vpop.f32.mrb[0].mxu0
    %v465 = vpop.f32.mrb[0].mxu0
    %466 = vdwg.mxu0
    %v467 = vsel %vm235, -inf, %v411
    %v468 = vsel %vm235, -inf, %v462
    %v469 = vsel %vm138, %v467, -inf
    %470 = vmax.xlane.f32.xlu0 %v469
    %v471 = vpop.xlane.xlu0 %470
    %v472 = vsel %vm138, %v468, -inf
    %473 = vmax.xlane.f32.xlu0 %v472
    %v474 = vpop.xlane.xlu0 %473
    %v475 = vsub.f32 %v467, %v471
    %v476 = vsub.f32 %v468, %v474
    %v477 = vpack.c.bf16 %v475, %v475
    %v478 = vpack.c.bf16 %v476, %v476
    %v480 = vmul.bf16 %v477, 1069105081
    %v481 = vpow.bf16.pop %v480
    %v483 = vmul.bf16 %v478, 1069105081
    %v484 = vpow.bf16.pop %v483
    %v485 = vunpack.c.l.bf16 %v481
    %v486 = vunpack.c.l.bf16 %v484
    %v487 = vsel %vm138, %v485, 0.0
    %488 = vadd.xlane.f32.xlu0 %v487
    %v489 = vpop.xlane.xlu0 %488
    %v490 = vsel %vm138, %v486, 0.0
    %491 = vadd.xlane.f32.xlu0 %v490
    %v492 = vpop.xlane.xlu0 %491
    %493 = vrot.lane.b32.xlu0 %v128, 56
    %v494 = vpop.permute.xlu0 %493
    %v496 = vsel %vm138, %v481, 0
    %v499 = vsel %vm267, %v494, 0
    %501 = vmatprep.subr.bf16.mxu0 0
    %502 = vmatpush1.bf16.msra.mxu0 %v499
    %503 = vmatprep.subr.bf16.mxu0 0
    %504 = vmatpush1.bf16.msra.mxu0 0
    %505 = vmatprep.subr.bf16.mxu0 0
    %506 = vmatpush1.bf16.msra.mxu0 0
    %507 = vmatprep.subr.bf16.mxu0 0
    %508 = vmatpush1.bf16.msra.mxu0 0
    %509 = vmatprep.subr.bf16.mxu0 0
    %510 = vmatpush1.bf16.msra.mxu0 0
    %511 = vmatprep.subr.bf16.mxu0 0
    %512 = vmatpush1.bf16.msra.mxu0 0
    %513 = vmatprep.subr.bf16.mxu0 0
    %514 = vmatpush1.bf16.msra.mxu0 0
    %515 = vmatprep.subr.bf16.mxu0 0
    %516 = vmatpush1.bf16.msra.mxu0 0
    %517 = vmatprep.subr.bf16.mxu0 0
    %518 = vmatpush1.bf16.msra.mxu0 0
    %519 = vmatprep.subr.bf16.mxu0 0
    %520 = vmatpush1.bf16.msra.mxu0 0
    %521 = vmatprep.subr.bf16.mxu0 0
    %522 = vmatpush1.bf16.msra.mxu0 0
    %523 = vmatprep.subr.bf16.mxu0 0
    %524 = vmatpush1.bf16.msra.mxu0 0
    %525 = vmatprep.subr.bf16.mxu0 0
    %526 = vmatpush1.bf16.msra.mxu0 0
    %527 = vmatprep.subr.bf16.mxu0 0
    %528 = vmatpush1.bf16.msra.mxu0 0
    %529 = vmatprep.subr.bf16.mxu0 0
    %530 = vmatpush1.bf16.msra.mxu0 0
    %531 = vmatprep.subr.bf16.mxu0 0
    %532 = vmatpush1.bf16.msra.mxu0 0
    %533 = vmatprep.mubr.bf16.mxu0 0
    %534 = vmatmul.mubr.bf16.gmra.mrb[0].mxu0 %v496
    %v535 = vpop.f32.mrb[0].mxu0
    %v536 = vadd.f32 0.0, %v535
    %v537 = vpop.f32.mrb[0].mxu0
    %v538 = vpop.f32.mrb[0].mxu0
    %v539 = vpop.f32.mrb[0].mxu0
    %540 = vdwg.mxu0
    %541 = vrot.lane.b32.xlu0 %v129, 56
    %v542 = vpop.permute.xlu0 %541
    %v544 = vsel %vm138, %v484, 0
    %v547 = vsel %vm267, %v542, 0
    %549 = vmatprep.subr.bf16.mxu0 0
    %550 = vmatpush1.bf16.msra.mxu0 %v547
    %551 = vmatprep.subr.bf16.mxu0 0
    %552 = vmatpush1.bf16.msra.mxu0 0
    %553 = vmatprep.subr.bf16.mxu0 0
    %554 = vmatpush1.bf16.msra.mxu0 0
    %555 = vmatprep.subr.bf16.mxu0 0
    %556 = vmatpush1.bf16.msra.mxu0 0
    %557 = vmatprep.subr.bf16.mxu0 0
    %558 = vmatpush1.bf16.msra.mxu0 0
    %559 = vmatprep.subr.bf16.mxu0 0
    %560 = vmatpush1.bf16.msra.mxu0 0
    %561 = vmatprep.subr.bf16.mxu0 0
    %562 = vmatpush1.bf16.msra.mxu0 0
    %563 = vmatprep.subr.bf16.mxu0 0
    %564 = vmatpush1.bf16.msra.mxu0 0
    %565 = vmatprep.subr.bf16.mxu0 0
    %566 = vmatpush1.bf16.msra.mxu0 0
    %567 = vmatprep.subr.bf16.mxu0 0
    %568 = vmatpush1.bf16.msra.mxu0 0
    %569 = vmatprep.subr.bf16.mxu0 0
    %570 = vmatpush1.bf16.msra.mxu0 0
    %571 = vmatprep.subr.bf16.mxu0 0
    %572 = vmatpush1.bf16.msra.mxu0 0
    %573 = vmatprep.subr.bf16.mxu0 0
    %574 = vmatpush1.bf16.msra.mxu0 0
    %575 = vmatprep.subr.bf16.mxu0 0
    %576 = vmatpush1.bf16.msra.mxu0 0
    %577 = vmatprep.subr.bf16.mxu0 0
    %578 = vmatpush1.bf16.msra.mxu0 0
    %579 = vmatprep.subr.bf16.mxu0 0
    %580 = vmatpush1.bf16.msra.mxu0 0
    %581 = vmatprep.mubr.bf16.mxu0 0
    %582 = vmatmul.mubr.bf16.gmra.mrb[0].mxu0 %v544
    %v583 = vpop.f32.mrb[0].mxu0
    %v584 = vadd.f32 0.0, %v583
    %v585 = vpop.f32.mrb[0].mxu0
    %v586 = vpop.f32.mrb[0].mxu0
    %v587 = vpop.f32.mrb[0].mxu0
    %588 = vdwg.mxu0
    %v589 = vrcp.pop %v489
    %v590 = vrcp.pop %v492
    %v591 = vmul.f32 %v536, %v589
    %v592 = vmul.f32 %v584, %v590
    %v593 = vpack.c.bf16 %v592, %v591
    %595 = vrot.lane.b32.xlu0 %v593, 8
    %v596 = vpop.permute.xlu0 %595
    %vm598 = vcmask 130112
    %599 = vst.msk [vmem:[#allocation2] sm:$0xff] %vm598, %v596
    %600 = vrot.lane.b32.xlu0 %v126, 112
    %v601 = vpop.permute.xlu0 %600
    %602 = vrot.lane.b32.xlu0 %v128, 80
    %v603 = vpop.permute.xlu0 %602
    %v605 = vsel %vm138, %v601, 0
    %v608 = vsel %vm138, %v603, 0
    %610 = vmatprep.subr.bf16.mxu0 0
    %611 = vmatpush1.bf16.xpose.msra.mxu0 %v608
    %612 = vmatprep.subr.bf16.mxu0 0
    %613 = vmatpush1.bf16.xpose.msra.mxu0 0
    %614 = vmatprep.subr.bf16.mxu0 0
    %615 = vmatpush1.bf16.xpose.msra.mxu0 0
    %616 = vmatprep.subr.bf16.mxu0 0
    %617 = vmatpush1.bf16.xpose.msra.mxu0 0
    %618 = vmatprep.subr.bf16.mxu0 0
    %619 = vmatpush1.bf16.xpose.msra.mxu0 0
    %620 = vmatprep.subr.bf16.mxu0 0
    %621 = vmatpush1.bf16.xpose.msra.mxu0 0
    %622 = vmatprep.subr.bf16.mxu0 0
    %623 = vmatpush1.bf16.xpose.msra.mxu0 0
    %624 = vmatprep.subr.bf16.mxu0 0
    %625 = vmatpush1.bf16.xpose.msra.mxu0 0
    %626 = vmatprep.subr.bf16.mxu0 0
    %627 = vmatpush1.bf16.xpose.msra.mxu0 0
    %628 = vmatprep.subr.bf16.mxu0 0
    %629 = vmatpush1.bf16.xpose.msra.mxu0 0
    %630 = vmatprep.subr.bf16.mxu0 0
    %631 = vmatpush1.bf16.xpose.msra.mxu0 0
    %632 = vmatprep.subr.bf16.mxu0 0
    %633 = vmatpush1.bf16.xpose.msra.mxu0 0
    %634 = vmatprep.subr.bf16.mxu0 0
    %635 = vmatpush1.bf16.xpose.msra.mxu0 0
    %636 = vmatprep.subr.bf16.mxu0 0
    %637 = vmatpush1.bf16.xpose.msra.mxu0 0
    %638 = vmatprep.subr.bf16.mxu0 0
    %639 = vmatpush1.bf16.xpose.msra.mxu0 0
    %640 = vmatprep.subr.bf16.mxu0 0
    %641 = vmatpush1.bf16.xpose.msra.mxu0 0
    %642 = vmatprep.mubr.bf16.mxu0 0
    %643 = vmatmul.mubr.bf16.gmra.mrb[0].mxu0 %v605
    %v644 = vpop.f32.mrb[0].mxu0
    %v645 = vadd.f32 0.0, %v644
    %v646 = vpop.f32.mrb[0].mxu0
    %v647 = vpop.f32.mrb[0].mxu0
    %v648 = vpop.f32.mrb[0].mxu0
    %649 = vdwg.mxu0
    %650 = vrot.lane.b32.xlu0 %v127, 112
    %v651 = vpop.permute.xlu0 %650
    %652 = vrot.lane.b32.xlu0 %v129, 80
    %v653 = vpop.permute.xlu0 %652
    %v655 = vsel %vm138, %v651, 0
    %v658 = vsel %vm138, %v653, 0
    %660 = vmatprep.subr.bf16.mxu0 0
    %661 = vmatpush1.bf16.xpose.msra.mxu0 %v658
    %662 = vmatprep.subr.bf16.mxu0 0
    %663 = vmatpush1.bf16.xpose.msra.mxu0 0
    %664 = vmatprep.subr.bf16.mxu0 0
    %665 = vmatpush1.bf16.xpose.msra.mxu0 0
    %666 = vmatprep.subr.bf16.mxu0 0
    %667 = vmatpush1.bf16.xpose.msra.mxu0 0
    %668 = vmatprep.subr.bf16.mxu0 0
    %669 = vmatpush1.bf16.xpose.msra.mxu0 0
    %670 = vmatprep.subr.bf16.mxu0 0
    %671 = vmatpush1.bf16.xpose.msra.mxu0 0
    %672 = vmatprep.subr.bf16.mxu0 0
    %673 = vmatpush1.bf16.xpose.msra.mxu0 0
    %674 = vmatprep.subr.bf16.mxu0 0
    %675 = vmatpush1.bf16.xpose.msra.mxu0 0
    %676 = vmatprep.subr.bf16.mxu0 0
    %677 = vmatpush1.bf16.xpose.msra.mxu0 0
    %678 = vmatprep.subr.bf16.mxu0 0
    %679 = vmatpush1.bf16.xpose.msra.mxu0 0
    %680 = vmatprep.subr.bf16.mxu0 0
    %681 = vmatpush1.bf16.xpose.msra.mxu0 0
    %682 = vmatprep.subr.bf16.mxu0 0
    %683 = vmatpush1.bf16.xpose.msra.mxu0 0
    %684 = vmatprep.subr.bf16.mxu0 0
    %685 = vmatpush1.bf16.xpose.msra.mxu0 0
    %686 = vmatprep.subr.bf16.mxu0 0
    %687 = vmatpush1.bf16.xpose.msra.mxu0 0
    %688 = vmatprep.subr.bf16.mxu0 0
    %689 = vmatpush1.bf16.xpose.msra.mxu0 0
    %690 = vmatprep.subr.bf16.mxu0 0
    %691 = vmatpush1.bf16.xpose.msra.mxu0 0
    %692 = vmatprep.mubr.bf16.mxu0 0
    %693 = vmatmul.mubr.bf16.gmra.mrb[0].mxu0 %v655
    %v694 = vpop.f32.mrb[0].mxu0
    %v695 = vadd.f32 0.0, %v694
    %v696 = vpop.f32.mrb[0].mxu0
    %v697 = vpop.f32.mrb[0].mxu0
    %v698 = vpop.f32.mrb[0].mxu0
    %699 = vdwg.mxu0
    %v700 = vsel %vm235, -inf, %v645
    %v701 = vsel %vm235, -inf, %v695
    %v702 = vsel %vm138, %v700, -inf
    %703 = vmax.xlane.f32.xlu0 %v702
    %v704 = vpop.xlane.xlu0 %703
    %v705 = vsel %vm138, %v701, -inf
    %706 = vmax.xlane.f32.xlu0 %v705
    %v707 = vpop.xlane.xlu0 %706
    %v708 = vsub.f32 %v700, %v704
    %v709 = vsub.f32 %v701, %v707
    %v710 = vpack.c.bf16 %v708, %v708
    %v711 = vpack.c.bf16 %v709, %v709
    %v713 = vmul.bf16 %v710, 1069105081
    %v714 = vpow.bf16.pop %v713
    %v716 = vmul.bf16 %v711, 1069105081
    %v717 = vpow.bf16.pop %v716
    %v718 = vunpack.c.l.bf16 %v714
    %v719 = vunpack.c.l.bf16 %v717
    %v720 = vsel %vm138, %v718, 0.0
    %721 = vadd.xlane.f32.xlu0 %v720
    %v722 = vpop.xlane.xlu0 %721
    %v723 = vsel %vm138, %v719, 0.0
    %724 = vadd.xlane.f32.xlu0 %v723
    %v725 = vpop.xlane.xlu0 %724
    %726 = vrot.lane.b32.xlu0 %v128, 48
    %v727 = vpop.permute.xlu0 %726
    %v729 = vsel %vm138, %v714, 0
    %v732 = vsel %vm267, %v727, 0
    %734 = vmatprep.subr.bf16.mxu0 0
    %735 = vmatpush1.bf16.msra.mxu0 %v732
    %736 = vmatprep.subr.bf16.mxu0 0
    %737 = vmatpush1.bf16.msra.mxu0 0
    %738 = vmatprep.subr.bf16.mxu0 0
    %739 = vmatpush1.bf16.msra.mxu0 0
    %740 = vmatprep.subr.bf16.mxu0 0
    %741 = vmatpush1.bf16.msra.mxu0 0
    %742 = vmatprep.subr.bf16.mxu0 0
    %743 = vmatpush1.bf16.msra.mxu0 0
    %744 = vmatprep.subr.bf16.mxu0 0
    %745 = vmatpush1.bf16.msra.mxu0 0
    %746 = vmatprep.subr.bf16.mxu0 0
    %747 = vmatpush1.bf16.msra.mxu0 0
    %748 = vmatprep.subr.bf16.mxu0 0
    %749 = vmatpush1.bf16.msra.mxu0 0
    %750 = vmatprep.subr.bf16.mxu0 0
    %751 = vmatpush1.bf16.msra.mxu0 0
    %752 = vmatprep.subr.bf16.mxu0 0
    %753 = vmatpush1.bf16.msra.mxu0 0
    %754 = vmatprep.subr.bf16.mxu0 0
    %755 = vmatpush1.bf16.msra.mxu0 0
    %756 = vmatprep.subr.bf16.mxu0 0
    %757 = vmatpush1.bf16.msra.mxu0 0
    %758 = vmatprep.subr.bf16.mxu0 0
    %759 = vmatpush1.bf16.msra.mxu0 0
    %760 = vmatprep.subr.bf16.mxu0 0
    %761 = vmatpush1.bf16.msra.mxu0 0
    %762 = vmatprep.subr.bf16.mxu0 0
    %763 = vmatpush1.bf16.msra.mxu0 0
    %764 = vmatprep.subr.bf16.mxu0 0
    %765 = vmatpush1.bf16.msra.mxu0 0
    %766 = vmatprep.mubr.bf16.mxu0 0
    %767 = vmatmul.mubr.bf16.gmra.mrb[0].mxu0 %v729
    %v768 = vpop.f32.mrb[0].mxu0
    %v769 = vadd.f32 0.0, %v768
    %v770 = vpop.f32.mrb[0].mxu0
    %v771 = vpop.f32.mrb[0].mxu0
    %v772 = vpop.f32.mrb[0].mxu0
    %773 = vdwg.mxu0
    %774 = vrot.lane.b32.xlu0 %v129, 48
    %v775 = vpop.permute.xlu0 %774
    %v777 = vsel %vm138, %v717, 0
    %v780 = vsel %vm267, %v775, 0
    %782 = vmatprep.subr.bf16.mxu0 0
    %783 = vmatpush1.bf16.msra.mxu0 %v780
    %784 = vmatprep.subr.bf16.mxu0 0
    %785 = vmatpush1.bf16.msra.mxu0 0
    %786 = vmatprep.subr.bf16.mxu0 0
    %787 = vmatpush1.bf16.msra.mxu0 0
    %788 = vmatprep.subr.bf16.mxu0 0
    %789 = vmatpush1.bf16.msra.mxu0 0
    %790 = vmatprep.subr.bf16.mxu0 0
    %791 = vmatpush1.bf16.msra.mxu0 0
    %792 = vmatprep.subr.bf16.mxu0 0
    %793 = vmatpush1.bf16.msra.mxu0 0
    %794 = vmatprep.subr.bf16.mxu0 0
    %795 = vmatpush1.bf16.msra.mxu0 0
    %796 = vmatprep.subr.bf16.mxu0 0
    %797 = vmatpush1.bf16.msra.mxu0 0
    %798 = vmatprep.subr.bf16.mxu0 0
    %799 = vmatpush1.bf16.msra.mxu0 0
    %800 = vmatprep.subr.bf16.mxu0 0
    %801 = vmatpush1.bf16.msra.mxu0 0
    %802 = vmatprep.subr.bf16.mxu0 0
    %803 = vmatpush1.bf16.msra.mxu0 0
    %804 = vmatprep.subr.bf16.mxu0 0
    %805 = vmatpush1.bf16.msra.mxu0 0
    %806 = vmatprep.subr.bf16.mxu0 0
    %807 = vmatpush1.bf16.msra.mxu0 0
    %808 = vmatprep.subr.bf16.mxu0 0
    %809 = vmatpush1.bf16.msra.mxu0 0
    %810 = vmatprep.subr.bf16.mxu0 0
    %811 = vmatpush1.bf16.msra.mxu0 0
    %812 = vmatprep.subr.bf16.mxu0 0
    %813 = vmatpush1.bf16.msra.mxu0 0
    %814 = vmatprep.mubr.bf16.mxu0 0
    %815 = vmatmul.mubr.bf16.gmra.mrb[0].mxu0 %v777
    %v816 = vpop.f32.mrb[0].mxu0
    %v817 = vadd.f32 0.0, %v816
    %v818 = vpop.f32.mrb[0].mxu0
    %v819 = vpop.f32.mrb[0].mxu0
    %v820 = vpop.f32.mrb[0].mxu0
    %821 = vdwg.mxu0
    %v822 = vrcp.pop %v722
    %v823 = vrcp.pop %v725
    %v824 = vmul.f32 %v769, %v822
    %v825 = vmul.f32 %v817, %v823
    %v826 = vpack.c.bf16 %v825, %v824
    %828 = vrot.lane.b32.xlu0 %v826, 16
    %v829 = vpop.permute.xlu0 %828
    %vm831 = vcmask 195712
    %832 = vst.msk [vmem:[#allocation2] sm:$0xff] %vm831, %v829
    %833 = vrot.lane.b32.xlu0 %v126, 104
    %v834 = vpop.permute.xlu0 %833
    %835 = vrot.lane.b32.xlu0 %v128, 72
    %v836 = vpop.permute.xlu0 %835
    %v838 = vsel %vm138, %v834, 0
    %v841 = vsel %vm138, %v836, 0
    %843 = vmatprep.subr.bf16.mxu0 0
    %844 = vmatpush1.bf16.xpose.msra.mxu0 %v841
    %845 = vmatprep.subr.bf16.mxu0 0
    %846 = vmatpush1.bf16.xpose.msra.mxu0 0
    %847 = vmatprep.subr.bf16.mxu0 0
    %848 = vmatpush1.bf16.xpose.msra.mxu0 0
    %849 = vmatprep.subr.bf16.mxu0 0
    %850 = vmatpush1.bf16.xpose.msra.mxu0 0
    %851 = vmatprep.subr.bf16.mxu0 0
    %852 = vmatpush1.bf16.xpose.msra.mxu0 0
    %853 = vmatprep.subr.bf16.mxu0 0
    %854 = vmatpush1.bf16.xpose.msra.mxu0 0
    %855 = vmatprep.subr.bf16.mxu0 0
    %856 = vmatpush1.bf16.xpose.msra.mxu0 0
    %857 = vmatprep.subr.bf16.mxu0 0
    %858 = vmatpush1.bf16.xpose.msra.mxu0 0
    %859 = vmatprep.subr.bf16.mxu0 0
    %860 = vmatpush1.bf16.xpose.msra.mxu0 0
    %861 = vmatprep.subr.bf16.mxu0 0
    %862 = vmatpush1.bf16.xpose.msra.mxu0 0
    %863 = vmatprep.subr.bf16.mxu0 0
    %864 = vmatpush1.bf16.xpose.msra.mxu0 0
    %865 = vmatprep.subr.bf16.mxu0 0
    %866 = vmatpush1.bf16.xpose.msra.mxu0 0
    %867 = vmatprep.subr.bf16.mxu0 0
    %868 = vmatpush1.bf16.xpose.msra.mxu0 0
    %869 = vmatprep.subr.bf16.mxu0 0
    %870 = vmatpush1.bf16.xpose.msra.mxu0 0
    %871 = vmatprep.subr.bf16.mxu0 0
    %872 = vmatpush1.bf16.xpose.msra.mxu0 0
    %873 = vmatprep.subr.bf16.mxu0 0
    %874 = vmatpush1.bf16.xpose.msra.mxu0 0
    %875 = vmatprep.mubr.bf16.mxu0 0
    %876 = vmatmul.mubr.bf16.gmra.mrb[0].mxu0 %v838
    %v877 = vpop.f32.mrb[0].mxu0
    %v878 = vadd.f32 0.0, %v877
    %v879 = vpop.f32.mrb[0].mxu0
    %v880 = vpop.f32.mrb[0].mxu0
    %v881 = vpop.f32.mrb[0].mxu0
    %882 = vdwg.mxu0
    %883 = vrot.lane.b32.xlu0 %v127, 104
    %v884 = vpop.permute.xlu0 %883
    %885 = vrot.lane.b32.xlu0 %v129, 72
    %v886 = vpop.permute.xlu0 %885
    %v888 = vsel %vm138, %v884, 0
    %v891 = vsel %vm138, %v886, 0
    %893 = vmatprep.subr.bf16.mxu0 0
    %894 = vmatpush1.bf16.xpose.msra.mxu0 %v891
    %895 = vmatprep.subr.bf16.mxu0 0
    %896 = vmatpush1.bf16.xpose.msra.mxu0 0
    %897 = vmatprep.subr.bf16.mxu0 0
    %898 = vmatpush1.bf16.xpose.msra.mxu0 0
    %899 = vmatprep.subr.bf16.mxu0 0
    %900 = vmatpush1.bf16.xpose.msra.mxu0 0
    %901 = vmatprep.subr.bf16.mxu0 0
    %902 = vmatpush1.bf16.xpose.msra.mxu0 0
    %903 = vmatprep.subr.bf16.mxu0 0
    %904 = vmatpush1.bf16.xpose.msra.mxu0 0
    %905 = vmatprep.subr.bf16.mxu0 0
    %906 = vmatpush1.bf16.xpose.msra.mxu0 0
    %907 = vmatprep.subr.bf16.mxu0 0
    %908 = vmatpush1.bf16.xpose.msra.mxu0 0
    %909 = vmatprep.subr.bf16.mxu0 0
    %910 = vmatpush1.bf16.xpose.msra.mxu0 0
    %911 = vmatprep.subr.bf16.mxu0 0
    %912 = vmatpush1.bf16.xpose.msra.mxu0 0
    %913 = vmatprep.subr.bf16.mxu0 0
    %914 = vmatpush1.bf16.xpose.msra.mxu0 0
    %915 = vmatprep.subr.bf16.mxu0 0
    %916 = vmatpush1.bf16.xpose.msra.mxu0 0
    %917 = vmatprep.subr.bf16.mxu0 0
    %918 = vmatpush1.bf16.xpose.msra.mxu0 0
    %919 = vmatprep.subr.bf16.mxu0 0
    %920 = vmatpush1.bf16.xpose.msra.mxu0 0
    %921 = vmatprep.subr.bf16.mxu0 0
    %922 = vmatpush1.bf16.xpose.msra.mxu0 0
    %923 = vmatprep.subr.bf16.mxu0 0
    %924 = vmatpush1.bf16.xpose.msra.mxu0 0
    %925 = vmatprep.mubr.bf16.mxu0 0
    %926 = vmatmul.mubr.bf16.gmra.mrb[0].mxu0 %v888
    %v927 = vpop.f32.mrb[0].mxu0
    %v928 = vadd.f32 0.0, %v927
    %v929 = vpop.f32.mrb[0].mxu0
    %v930 = vpop.f32.mrb[0].mxu0
    %v931 = vpop.f32.mrb[0].mxu0
    %932 = vdwg.mxu0
    %v933 = vsel %vm235, -inf, %v878
    %v934 = vsel %vm235, -inf, %v928
    %v935 = vsel %vm138, %v933, -inf
    %936 = vmax.xlane.f32.xlu0 %v935
    %v937 = vpop.xlane.xlu0 %936
    %v938 = vsel %vm138, %v934, -inf
    %939 = vmax.xlane.f32.xlu0 %v938
    %v940 = vpop.xlane.xlu0 %939
    %v941 = vsub.f32 %v933, %v937
    %v942 = vsub.f32 %v934, %v940
    %v943 = vpack.c.bf16 %v941, %v941
    %v944 = vpack.c.bf16 %v942, %v942
    %v946 = vmul.bf16 %v943, 1069105081
    %v947 = vpow.bf16.pop %v946
    %v949 = vmul.bf16 %v944, 1069105081
    %v950 = vpow.bf16.pop %v949
    %v951 = vunpack.c.l.bf16 %v947
    %v952 = vunpack.c.l.bf16 %v950
    %v953 = vsel %vm138, %v951, 0.0
    %954 = vadd.xlane.f32.xlu0 %v953
    %v955 = vpop.xlane.xlu0 %954
    %v956 = vsel %vm138, %v952, 0.0
    %957 = vadd.xlane.f32.xlu0 %v956
    %v958 = vpop.xlane.xlu0 %957
    %959 = vrot.lane.b32.xlu0 %v128, 40
    %v960 = vpop.permute.xlu0 %959
    %v962 = vsel %vm138, %v947, 0
    %v965 = vsel %vm267, %v960, 0
    %967 = vmatprep.subr.bf16.mxu0 0
    %968 = vmatpush1.bf16.msra.mxu0 %v965
    %969 = vmatprep.subr.bf16.mxu0 0
    %970 = vmatpush1.bf16.msra.mxu0 0
    %971 = vmatprep.subr.bf16.mxu0 0
    %972 = vmatpush1.bf16.msra.mxu0 0
    %973 = vmatprep.subr.bf16.mxu0 0
    %974 = vmatpush1.bf16.msra.mxu0 0
    %975 = vmatprep.subr.bf16.mxu0 0
    %976 = vmatpush1.bf16.msra.mxu0 0
    %977 = vmatprep.subr.bf16.mxu0 0
    %978 = vmatpush1.bf16.msra.mxu0 0
    %979 = vmatprep.subr.bf16.mxu0 0
    %980 = vmatpush1.bf16.msra.mxu0 0
    %981 = vmatprep.subr.bf16.mxu0 0
    %982 = vmatpush1.bf16.msra.mxu0 0
    %983 = vmatprep.subr.bf16.mxu0 0
    %984 = vmatpush1.bf16.msra.mxu0 0
    %985 = vmatprep.subr.bf16.mxu0 0
    %986 = vmatpush1.bf16.msra.mxu0 0
    %987 = vmatprep.subr.bf16.mxu0 0
    %988 = vmatpush1.bf16.msra.mxu0 0
    %989 = vmatprep.subr.bf16.mxu0 0
    %990 = vmatpush1.bf16.msra.mxu0 0
    %991 = vmatprep.subr.bf16.mxu0 0
    %992 = vmatpush1.bf16.msra.mxu0 0
    %993 = vmatprep.subr.bf16.mxu0 0
    %994 = vmatpush1.bf16.msra.mxu0 0
    %995 = vmatprep.subr.bf16.mxu0 0
    %996 = vmatpush1.bf16.msra.mxu0 0
    %997 = vmatprep.subr.bf16.mxu0 0
    %998 = vmatpush1.bf16.msra.mxu0 0
    %999 = vmatprep.mubr.bf16.mxu0 0
    %1000 = vmatmul.mubr.bf16.gmra.mrb[0].mxu0 %v962
    %v1001 = vpop.f32.mrb[0].mxu0
    %v1002 = vadd.f32 0.0, %v1001
    %v1003 = vpop.f32.mrb[0].mxu0
    %v1004 = vpop.f32.mrb[0].mxu0
    %v1005 = vpop.f32.mrb[0].mxu0
    %1006 = vdwg.mxu0
    %1007 = vrot.lane.b32.xlu0 %v129, 40
    %v1008 = vpop.permute.xlu0 %1007
    %v1010 = vsel %vm138, %v950, 0
    %v1013 = vsel %vm267, %v1008, 0
    %1015 = vmatprep.subr.bf16.mxu0 0
    %1016 = vmatpush1.bf16.msra.mxu0 %v1013
    %1017 = vmatprep.subr.bf16.mxu0 0
    %1018 = vmatpush1.bf16.msra.mxu0 0
    %1019 = vmatprep.subr.bf16.mxu0 0
    %1020 = vmatpush1.bf16.msra.mxu0 0
    %1021 = vmatprep.subr.bf16.mxu0 0
    %1022 = vmatpush1.bf16.msra.mxu0 0
    %1023 = vmatprep.subr.bf16.mxu0 0
    %1024 = vmatpush1.bf16.msra.mxu0 0
    %1025 = vmatprep.subr.bf16.mxu0 0
    %1026 = vmatpush1.bf16.msra.mxu0 0
    %1027 = vmatprep.subr.bf16.mxu0 0
    %1028 = vmatpush1.bf16.msra.mxu0 0
    %1029 = vmatprep.subr.bf16.mxu0 0
    %1030 = vmatpush1.bf16.msra.mxu0 0
    %1031 = vmatprep.subr.bf16.mxu0 0
    %1032 = vmatpush1.bf16.msra.mxu0 0
    %1033 = vmatprep.subr.bf16.mxu0 0
    %1034 = vmatpush1.bf16.msra.mxu0 0
    %1035 = vmatprep.subr.bf16.mxu0 0
    %1036 = vmatpush1.bf16.msra.mxu0 0
    %1037 = vmatprep.subr.bf16.mxu0 0
    %1038 = vmatpush1.bf16.msra.mxu0 0
    %1039 = vmatprep.subr.bf16.mxu0 0
    %1040 = vmatpush1.bf16.msra.mxu0 0
    %1041 = vmatprep.subr.bf16.mxu0 0
    %1042 = vmatpush1.bf16.msra.mxu0 0
    %1043 = vmatprep.subr.bf16.mxu0 0
    %1044 = vmatpush1.bf16.msra.mxu0 0
    %1045 = vmatprep.subr.bf16.mxu0 0
    %1046 = vmatpush1.bf16.msra.mxu0 0
    %1047 = vmatprep.mubr.bf16.mxu0 0
    %1048 = vmatmul.mubr.bf16.gmra.mrb[0].mxu0 %v1010
    %v1049 = vpop.f32.mrb[0].mxu0
    %v1050 = vadd.f32 0.0, %v1049
    %v1051 = vpop.f32.mrb[0].mxu0
    %v1052 = vpop.f32.mrb[0].mxu0
    %v1053 = vpop.f32.mrb[0].mxu0
    %1054 = vdwg.mxu0
    %v1055 = vrcp.pop %v955
    %v1056 = vrcp.pop %v958
    %v1057 = vmul.f32 %v1002, %v1055
    %v1058 = vmul.f32 %v1050, %v1056
    %v1059 = vpack.c.bf16 %v1058, %v1057
    %1061 = vrot.lane.b32.xlu0 %v1059, 24
    %v1062 = vpop.permute.xlu0 %1061
    %vm1064 = vcmask 261312
    %1065 = vst.msk [vmem:[#allocation2] sm:$0xff] %vm1064, %v1062
    %v1066 = vld [vmem:[#allocation2] sm:$0xff]
    %v1067 = vld [vmem:[#allocation8] sm:$0xf]
    %v1068 = vld [vmem:[#allocation8 + $0x4] sm:$0xf]
    %v1069 = vld [vmem:[#allocation8 + $0x8] sm:$0xf]
    %v1070 = vld [vmem:[#allocation8 + $0xc] sm:$0xf]
    %v1071 = vld [vmem:[%s3] sm:$0x1]
    %v1073 = vlaneseq
    %v1074 = vshrl.u32 %v1073, 7
    %v1075 = vsub.s32 0, %v1074
    %v1076 = vrot.slane %v1071, %v1075
    %v1082 = vunpack.c.l.b16 %v1067
    %v1083 = vunpack.c.l.b16 %v1068
    %v1084 = vunpack.c.l.b16 %v1069
    %v1085 = vunpack.c.l.b16 %v1070
    %v1086 = vpack.c.b16 %v1083, %v1082
    %v1087 = vpack.c.b16 %v1085, %v1084
    %v1091 = vsel %vm79, %v1066, 0
    %1093 = vmatprep.subr.bf16.mxu0 0
    %1094 = vmatpush1.bf16.msra.mxu0 %v1086
    %1095 = vmatprep.subr.bf16.mxu0 0
    %1096 = vmatpush1.bf16.msra.mxu0 %v1087
    %1097 = vmatprep.subr.bf16.mxu0 0
    %1098 = vmatpush1.bf16.msra.mxu0 0
    %1099 = vmatprep.subr.bf16.mxu0 0
    %1100 = vmatpush1.bf16.msra.mxu0 0
    %1101 = vmatprep.subr.bf16.mxu0 0
    %1102 = vmatpush1.bf16.msra.mxu0 0
    %1103 = vmatprep.subr.bf16.mxu0 0
    %1104 = vmatpush1.bf16.msra.mxu0 0
    %1105 = vmatprep.subr.bf16.mxu0 0
    %1106 = vmatpush1.bf16.msra.mxu0 0
    %1107 = vmatprep.subr.bf16.mxu0 0
    %1108 = vmatpush1.bf16.msra.mxu0 0
    %1109 = vmatprep.subr.bf16.mxu0 0
    %1110 = vmatpush1.bf16.msra.mxu0 0
    %1111 = vmatprep.subr.bf16.mxu0 0
    %1112 = vmatpush1.bf16.msra.mxu0 0
    %1113 = vmatprep.subr.bf16.mxu0 0
    %1114 = vmatpush1.bf16.msra.mxu0 0
    %1115 = vmatprep.subr.bf16.mxu0 0
    %1116 = vmatpush1.bf16.msra.mxu0 0
    %1117 = vmatprep.subr.bf16.mxu0 0
    %1118 = vmatpush1.bf16.msra.mxu0 0
    %1119 = vmatprep.subr.bf16.mxu0 0
    %1120 = vmatpush1.bf16.msra.mxu0 0
    %1121 = vmatprep.subr.bf16.mxu0 0
    %1122 = vmatpush1.bf16.msra.mxu0 0
    %1123 = vmatprep.subr.bf16.mxu0 0
    %1124 = vmatpush1.bf16.msra.mxu0 0
    %1125 = vmatprep.mubr.bf16.mxu0 0
    %1126 = vmatmul.mubr.bf16.gmra.mrb[0].mxu0 %v1091
    %v1127 = vpop.f32.mrb[0].mxu0
    %v1128 = vadd.f32 %v1076, %v1127
    %v1129 = vpop.f32.mrb[0].mxu0
    %v1130 = vpop.f32.mrb[0].mxu0
    %v1131 = vadd.f32 %v1076, %v1130
    %v1132 = vpop.f32.mrb[0].mxu0
    %1133 = vdwg.mxu0
    %1134 = vst.msk [vmem:[#allocation9] sm:$0xff] %vm79, %v1128
    %1135 = vst.msk [vmem:[#allocation9 + $0x8] sm:$0xff] %vm79, %v1131
    // Predicated region
    $region30: #{tpu_custom_call.1} parent=1 // pred_check
      _
    $region31: #{tpu_custom_call.1} parent=1 // pred_check_branch
      %1137 = sbr.rel (0) target = $region33
    $region32: #{tpu_custom_call.1} parent=1 // pred_region
      %s1139 = ssub.s32 256, 256
      %1140 = vsyncadd [#allocation5], %s1139
      %s1141 = sshll.u32 [#allocation9], 4
      %s1142 = int_to_ptr.vmem [resolvable:$true] %s1141
      %1147 = dma.vmem_to_hbm [thread:$0]  %s1142, 256, %s4, [#allocation5], 128, 128, 8
    $region33: #{tpu_custom_call.1} parent=1 // pred_fallthru
      _
    // Predicated region
    $region34: #{tpu_custom_call.1} parent=1 // pred_check
      _
    $region35: #{tpu_custom_call.1} parent=1 // pred_check_branch
      %1149 = sbr.rel (0) target = $region37
    $region36: #{tpu_custom_call.1} parent=1 // pred_region
      %1150 = dma.done [#allocation5], 256
    $region37: #{tpu_custom_call.1} parent=1 // pred_fallthru
      _
    %1151 = vsyncpa [#allocation4], 1
    %1152 = vsyncpa [#allocation7], 1
    %1153 = vsyncpa [#allocation5], 1

// kernel: tpu_custom_call.1
$region0: #{tpu_custom_call.1}
  #allocation0 [shape = 'u32[]', space=smem, size = 0x4, offset = 0x4, fixed_abs, tag = 'smem constant byte address 0x4 - core index']
  #allocation1 [shape = 'u32[144,128]{1,0:T(1,128)}', space=vmem, size = 0x12000, scoped, tag = 'internal scratch']
  #allocation2 [shape = 'bf16[16,32]{1,0:T(16,128)(2,1)}', space=vmem, size = 0x1000, scoped, tag = 'scratch operand']
  %s0 = inlined_call_operand.hbm [shape: f32[2,8,32], index: 0, kind: input, shape index: {}]
  %s1 = inlined_call_operand.hbm [shape: bf16[32,96], index: 1, kind: input, shape index: {}]
  %s2 = inlined_call_operand.hbm [shape: bf16[32,32], index: 2, kind: input, shape index: {}]
  %s3 = inlined_call_operand.vmem [shape: f32[1,32], index: 3, kind: input, shape index: {}]
  %s4 = inlined_call_operand.hbm [shape: f32[2,8,32], index: 4, kind: output, shape index: {}]
  %s5 = sld [smem:[#allocation0]]
  $region38: #{tpu_custom_call.1} parent=0
    _
  %s7 = ssub.s32 1, %s5
  %s8 = scalar_select 0, %s7, %s5
  $region1: #{tpu_custom_call.1} parent=0
    #allocation3 [shape = 'u8[8192]{0}', space=vmem, size = 0x2000, scoped, tag = 'input window, operand 0, single buffered']
    #allocation4 [shape = 's32[1]{0}', space=sflag, size = 0x4, scoped, tag = 'scoped memory for tpu_custom_call.1']
    #allocation5 [shape = 's32[1]{0}', space=sflag, size = 0x4, scoped, tag = 'scoped memory for tpu_custom_call.1']
    #allocation6 [shape = 'u8[8192]{0}', space=vmem, size = 0x2000, scoped, tag = 'input window, operand 1, single buffered']
    #allocation7 [shape = 's32[1]{0}', space=sflag, size = 0x4, scoped, tag = 'scoped memory for tpu_custom_call.1']
    #allocation8 [shape = 'u8[8192]{0}', space=vmem, size = 0x2000, scoped, tag = 'input window, operand 2, single buffered']
    #allocation9 [shape = 'u8[8192]{0}', space=vmem, size = 0x2000, scoped, tag = 'output window, operand 0, single buffered']
    %9 = vsyncpa [#allocation4], 0
    %10 = vsyncpa [#allocation7], 0
    %11 = vsyncpa [#allocation5], 0
    // Predicated region
    $region2: #{tpu_custom_call.1} parent=1 // pred_check
      _
    $region3: #{tpu_custom_call.1} parent=1 // pred_check_branch
      %13 = sbr.rel (0) target = $region5
    $region4: #{tpu_custom_call.1} parent=1 // pred_region
      %s15 = ssub.s32 256, 256
      %16 = vsyncadd [#allocation4], %s15
      %s17 = sshll.u32 [#allocation3], 4
      %s18 = int_to_ptr.vmem [resolvable:$true] %s17
      %23 = dma.hbm_to_vmem [thread:$0]  %s0, 256, %s18, [#allocation4], 128, 128, 8
    $region5: #{tpu_custom_call.1} parent=1 // pred_fallthru
      _
    // Predicated region
    $region6: #{tpu_custom_call.1} parent=1 // pred_check
      _
    $region7: #{tpu_custom_call.1} parent=1 // pred_check_branch
      %25 = sbr.rel (0) target = $region9
    $region8: #{tpu_custom_call.1} parent=1 // pred_region
      %s27 = ssub.s32 256, 256
      %28 = vsyncadd [#allocation7], %s27
      %s29 = sshll.u32 [#allocation6], 4
      %s30 = int_to_ptr.vmem [resolvable:$true] %s29
      %35 = dma.hbm_to_vmem [thread:$0]  %s1, 256, %s30, [#allocation7], 64, 64, 4
    $region9: #{tpu_custom_call.1} parent=1 // pred_fallthru
      _
    // Predicated region
    $region10: #{tpu_custom_call.1} parent=1 // pred_check
      _
    $region11: #{tpu_custom_call.1} parent=1 // pred_check_branch
      %37 = sbr.rel (0) target = $region13
    $region12: #{tpu_custom_call.1} parent=1 // pred_region
      %s39 = ssub.s32 256, 256
      %40 = vsyncadd [#allocation7], %s39
      %s41 = sshll.u32 [#allocation8], 4
      %s42 = int_to_ptr.vmem [resolvable:$true] %s41
      %47 = dma.hbm_to_vmem [thread:$0]  %s2, 256, %s42, [#allocation7], 64, 64, 4
    $region13: #{tpu_custom_call.1} parent=1 // pred_fallthru
      _
    // Predicated region
    $region14: #{tpu_custom_call.1} parent=1 // pred_check
      _
    $region15: #{tpu_custom_call.1} parent=1 // pred_check_branch
      %49 = sbr.rel (0) target = $region17
    $region16: #{tpu_custom_call.1} parent=1 // pred_region
      _
    $region17: #{tpu_custom_call.1} parent=1 // pred_fallthru
      _
    // Predicated region
    $region18: #{tpu_custom_call.1} parent=1 // pred_check
      _
    $region19: #{tpu_custom_call.1} parent=1 // pred_check_branch
      %51 = sbr.rel (0) target = $region21
    $region20: #{tpu_custom_call.1} parent=1 // pred_region
      %52 = dma.done [#allocation4], 256
    $region21: #{tpu_custom_call.1} parent=1 // pred_fallthru
      _
    // Predicated region
    $region22: #{tpu_custom_call.1} parent=1 // pred_check
      _
    $region23: #{tpu_custom_call.1} parent=1 // pred_check_branch
      %54 = sbr.rel (0) target = $region25
    $region24: #{tpu_custom_call.1} parent=1 // pred_region
      %55 = dma.done [#allocation7], 256
    $region25: #{tpu_custom_call.1} parent=1 // pred_fallthru
      _
    // Predicated region
    $region26: #{tpu_custom_call.1} parent=1 // pred_check
      _
    $region27: #{tpu_custom_call.1} parent=1 // pred_check_branch
      %57 = sbr.rel (0) target = $region29
    $region28: #{tpu_custom_call.1} parent=1 // pred_region
      %58 = dma.done [#allocation7], 256
    $region29: #{tpu_custom_call.1} parent=1 // pred_fallthru
      _
    %v60 = vld [vmem:[#allocation3] sm:$0xff]
    %v61 = vld [vmem:[#allocation3 + $0x8] sm:$0xff]
    %v62 = vpack.c.bf16 %v61, %v60
    %v63 = vld [vmem:[#allocation6] sm:$0xf]
    %v64 = vld [vmem:[#allocation6 + $0x4] sm:$0xf]
    %v65 = vld [vmem:[#allocation6 + $0x8] sm:$0xf]
    %v66 = vld [vmem:[#allocation6 + $0xc] sm:$0xf]
    %v71 = vunpack.c.l.b16 %v63
    %v72 = vunpack.c.l.b16 %v64
    %v73 = vunpack.c.l.b16 %v65
    %v74 = vunpack.c.l.b16 %v66
    %v75 = vpack.c.b16 %v72, %v71
    %v76 = vpack.c.b16 %v74, %v73
    %vm79 = vcmask 261120
    %v81 = vsel %vm79, %v62, 0
    %83 = vmatprep.subr.bf16.mxu0 0
    %84 = vmatpush1.bf16.msra.mxu0 %v75
    %85 = vmatprep.subr.bf16.mxu0 0
    %86 = vmatpush1.bf16.msra.mxu0 %v76
    %87 = vmatprep.subr.bf16.mxu0 0
    %88 = vmatpush1.bf16.msra.mxu0 0
    %89 = vmatprep.subr.bf16.mxu0 0
    %90 = vmatpush1.bf16.msra.mxu0 0
    %91 = vmatprep.subr.bf16.mxu0 0
    %92 = vmatpush1.bf16.msra.mxu0 0
    %93 = vmatprep.subr.bf16.mxu0 0
    %94 = vmatpush1.bf16.msra.mxu0 0
    %95 = vmatprep.subr.bf16.mxu0 0
    %96 = vmatpush1.bf16.msra.mxu0 0
    %97 = vmatprep.subr.bf16.mxu0 0
    %98 = vmatpush1.bf16.msra.mxu0 0
    %99 = vmatprep.subr.bf16.mxu0 0
    %100 = vmatpush1.bf16.msra.mxu0 0
    %101 = vmatprep.subr.bf16.mxu0 0
    %102 = vmatpush1.bf16.msra.mxu0 0
    %103 = vmatprep.subr.bf16.mxu0 0
    %104 = vmatpush1.bf16.msra.mxu0 0
    %105 = vmatprep.subr.bf16.mxu0 0
    %106 = vmatpush1.bf16.msra.mxu0 0
    %107 = vmatprep.subr.bf16.mxu0 0
    %108 = vmatpush1.bf16.msra.mxu0 0
    %109 = vmatprep.subr.bf16.mxu0 0
    %110 = vmatpush1.bf16.msra.mxu0 0
    %111 = vmatprep.subr.bf16.mxu0 0
    %112 = vmatpush1.bf16.msra.mxu0 0
    %113 = vmatprep.subr.bf16.mxu0 0
    %114 = vmatpush1.bf16.msra.mxu0 0
    %115 = vmatprep.mubr.bf16.mxu0 0
    %116 = vmatmul.mubr.bf16.gmra.mrb[0].mxu0 %v81
    %v117 = vpop.f32.mrb[0].mxu0
    %v118 = vadd.f32 0.0, %v117
    %v119 = vpop.f32.mrb[0].mxu0
    %v120 = vpop.f32.mrb[0].mxu0
    %v121 = vadd.f32 0.0, %v120
    %v122 = vpop.f32.mrb[0].mxu0
    %123 = vdwg.mxu0
    %v124 = vmul.f32 %v118, 0.35355338
    %v125 = vmul.f32 %v121, 0.35355338
    %v126 = vpack.c.bf16 %v124, %v124
    %v127 = vpack.c.bf16 %v125, %v125
    %v128 = vpack.c.bf16 %v118, %v118
    %v129 = vpack.c.bf16 %v121, %v121
    %v130 = vlaneseq
    %v131 = vshrl.u32 %v130, 7
    %v132 = vlaneseq
    %v133 = vand.u32 %v132, 127
    %vm134 = vcmp.gt.s32.totalorder %v133, %v131
    %136 = vrot.lane.b32.xlu0 %v128, 96
    %v137 = vpop.permute.xlu0 %136
    %vm138 = vcmask 64512
    %v140 = vsel %vm138, %v126, 0
    %v143 = vsel %vm138, %v137, 0
    %145 = vmatprep.subr.bf16.mxu0 0
    %146 = vmatpush1.bf16.xpose.msra.mxu0 %v143
    %147 = vmatprep.subr.bf16.mxu0 0
    %148 = vmatpush1.bf16.xpose.msra.mxu0 0
    %149 = vmatprep.subr.bf16.mxu0 0
    %150 = vmatpush1.bf16.xpose.msra.mxu0 0
    %151 = vmatprep.subr.bf16.mxu0 0
    %152 = vmatpush1.bf16.xpose.msra.mxu0 0
    %153 = vmatprep.subr.bf16.mxu0 0
    %154 = vmatpush1.bf16.xpose.msra.mxu0 0
    %155 = vmatprep.subr.bf16.mxu0 0
    %156 = vmatpush1.bf16.xpose.msra.mxu0 0
    %157 = vmatprep.subr.bf16.mxu0 0
    %158 = vmatpush1.bf16.xpose.msra.mxu0 0
    %159 = vmatprep.subr.bf16.mxu0 0
    %160 = vmatpush1.bf16.xpose.msra.mxu0 0
    %161 = vmatprep.subr.bf16.mxu0 0
    %162 = vmatpush1.bf16.xpose.msra.mxu0 0
    %163 = vmatprep.subr.bf16.mxu0 0
    %164 = vmatpush1.bf16.xpose.msra.mxu0 0
    %165 = vmatprep.subr.bf16.mxu0 0
    %166 = vmatpush1.bf16.xpose.msra.mxu0 0
    %167 = vmatprep.subr.bf16.mxu0 0
    %168 = vmatpush1.bf16.xpose.msra.mxu0 0
    %169 = vmatprep.subr.bf16.mxu0 0
    %170 = vmatpush1.bf16.xpose.msra.mxu0 0
    %171 = vmatprep.subr.bf16.mxu0 0
    %172 = vmatpush1.bf16.xpose.msra.mxu0 0
    %173 = vmatprep.subr.bf16.mxu0 0
    %174 = vmatpush1.bf16.xpose.msra.mxu0 0
    %175 = vmatprep.subr.bf16.mxu0 0
    %176 = vmatpush1.bf16.xpose.msra.mxu0 0
    %177 = vmatprep.mubr.bf16.mxu0 0
    %178 = vmatmul.mubr.bf16.gmra.mrb[0].mxu0 %v140
    %v179 = vpop.f32.mrb[0].mxu0
    %v180 = vadd.f32 0.0, %v179
    %v181 = vpop.f32.mrb[0].mxu0
    %v182 = vpop.f32.mrb[0].mxu0
    %v183 = vpop.f32.mrb[0].mxu0
    %184 = vdwg.mxu0
    %186 = vrot.lane.b32.xlu0 %v129, 96
    %v187 = vpop.permute.xlu0 %186
    %v189 = vsel %vm138, %v127, 0
    %v192 = vsel %vm138, %v187, 0
    %194 = vmatprep.subr.bf16.mxu0 0
    %195 = vmatpush1.bf16.xpose.msra.mxu0 %v192
    %196 = vmatprep.subr.bf16.mxu0 0
    %197 = vmatpush1.bf16.xpose.msra.mxu0 0
    %198 = vmatprep.subr.bf16.mxu0 0
    %199 = vmatpush1.bf16.xpose.msra.mxu0 0
    %200 = vmatprep.subr.bf16.mxu0 0
    %201 = vmatpush1.bf16.xpose.msra.mxu0 0
    %202 = vmatprep.subr.bf16.mxu0 0
    %203 = vmatpush1.bf16.xpose.msra.mxu0 0
    %204 = vmatprep.subr.bf16.mxu0 0
    %205 = vmatpush1.bf16.xpose.msra.mxu0 0
    %206 = vmatprep.subr.bf16.mxu0 0
    %207 = vmatpush1.bf16.xpose.msra.mxu0 0
    %208 = vmatprep.subr.bf16.mxu0 0
    %209 = vmatpush1.bf16.xpose.msra.mxu0 0
    %210 = vmatprep.subr.bf16.mxu0 0
    %211 = vmatpush1.bf16.xpose.msra.mxu0 0
    %212 = vmatprep.subr.bf16.mxu0 0
    %213 = vmatpush1.bf16.xpose.msra.mxu0 0
    %214 = vmatprep.subr.bf16.mxu0 0
    %215 = vmatpush1.bf16.xpose.msra.mxu0 0
    %216 = vmatprep.subr.bf16.mxu0 0
    %217 = vmatpush1.bf16.xpose.msra.mxu0 0
    %218 = vmatprep.subr.bf16.mxu0 0
    %219 = vmatpush1.bf16.xpose.msra.mxu0 0
    %220 = vmatprep.subr.bf16.mxu0 0
    %221 = vmatpush1.bf16.xpose.msra.mxu0 0
    %222 = vmatprep.subr.bf16.mxu0 0
    %223 = vmatpush1.bf16.xpose.msra.mxu0 0
    %224 = vmatprep.subr.bf16.mxu0 0
    %225 = vmatpush1.bf16.xpose.msra.mxu0 0
    %226 = vmatprep.mubr.bf16.mxu0 0
    %227 = vmatmul.mubr.bf16.gmra.mrb[0].mxu0 %v189
    %v228 = vpop.f32.mrb[0].mxu0
    %v229 = vadd.f32 0.0, %v228
    %v230 = vpop.f32.mrb[0].mxu0
    %v231 = vpop.f32.mrb[0].mxu0
    %v232 = vpop.f32.mrb[0].mxu0
    %233 = vdwg.mxu0
    %v234 = vsel %vm134, 1, 0
    %vm235 = vcmp.eq.s32.totalorder %v234, 1
    %v236 = vsel %vm235, -inf, %v180
    %v237 = vsel %vm235, -inf, %v229
    %v238 = vsel %vm138, %v236, -inf
    %239 = vmax.xlane.f32.xlu0 %v238
    %v240 = vpop.xlane.xlu0 %239
    %v241 = vsel %vm138, %v237, -inf
    %242 = vmax.xlane.f32.xlu0 %v241
    %v243 = vpop.xlane.xlu0 %242
    %v244 = vsub.f32 %v236, %v240
    %v245 = vsub.f32 %v237, %v243
    %v246 = vpack.c.bf16 %v244, %v244
    %v247 = vpack.c.bf16 %v245, %v245
    %v249 = vmul.bf16 %v246, 1069105081
    %v250 = vpow.bf16.pop %v249
    %v252 = vmul.bf16 %v247, 1069105081
    %v253 = vpow.bf16.pop %v252
    %v254 = vunpack.c.l.bf16 %v250
    %v255 = vunpack.c.l.bf16 %v253
    %v256 = vsel %vm138, %v254, 0.0
    %257 = vadd.xlane.f32.xlu0 %v256
    %v258 = vpop.xlane.xlu0 %257
    %v259 = vsel %vm138, %v255, 0.0
    %260 = vadd.xlane.f32.xlu0 %v259
    %v261 = vpop.xlane.xlu0 %260
    %262 = vrot.lane.b32.xlu0 %v128, 64
    %v263 = vpop.permute.xlu0 %262
    %v265 = vsel %vm138, %v250, 0
    %vm267 = vcmask 1043456
    %v269 = vsel %vm267, %v263, 0
    %271 = vmatprep.subr.bf16.mxu0 0
    %272 = vmatpush1.bf16.msra.mxu0 %v269
    %273 = vmatprep.subr.bf16.mxu0 0
    %274 = vmatpush1.bf16.msra.mxu0 0
    %275 = vmatprep.subr.bf16.mxu0 0
    %276 = vmatpush1.bf16.msra.mxu0 0
    %277 = vmatprep.subr.bf16.mxu0 0
    %278 = vmatpush1.bf16.msra.mxu0 0
    %279 = vmatprep.subr.bf16.mxu0 0
    %280 = vmatpush1.bf16.msra.mxu0 0
    %281 = vmatprep.subr.bf16.mxu0 0
    %282 = vmatpush1.bf16.msra.mxu0 0
    %283 = vmatprep.subr.bf16.mxu0 0
    %284 = vmatpush1.bf16.msra.mxu0 0
    %285 = vmatprep.subr.bf16.mxu0 0
    %286 = vmatpush1.bf16.msra.mxu0 0
    %287 = vmatprep.subr.bf16.mxu0 0
    %288 = vmatpush1.bf16.msra.mxu0 0
    %289 = vmatprep.subr.bf16.mxu0 0
    %290 = vmatpush1.bf16.msra.mxu0 0
    %291 = vmatprep.subr.bf16.mxu0 0
    %292 = vmatpush1.bf16.msra.mxu0 0
    %293 = vmatprep.subr.bf16.mxu0 0
    %294 = vmatpush1.bf16.msra.mxu0 0
    %295 = vmatprep.subr.bf16.mxu0 0
    %296 = vmatpush1.bf16.msra.mxu0 0
    %297 = vmatprep.subr.bf16.mxu0 0
    %298 = vmatpush1.bf16.msra.mxu0 0
    %299 = vmatprep.subr.bf16.mxu0 0
    %300 = vmatpush1.bf16.msra.mxu0 0
    %301 = vmatprep.subr.bf16.mxu0 0
    %302 = vmatpush1.bf16.msra.mxu0 0
    %303 = vmatprep.mubr.bf16.mxu0 0
    %304 = vmatmul.mubr.bf16.gmra.mrb[0].mxu0 %v265
    %v305 = vpop.f32.mrb[0].mxu0
    %v306 = vadd.f32 0.0, %v305
    %v307 = vpop.f32.mrb[0].mxu0
    %v308 = vpop.f32.mrb[0].mxu0
    %v309 = vpop.f32.mrb[0].mxu0
    %310 = vdwg.mxu0
    %311 = vrot.lane.b32.xlu0 %v129, 64
    %v312 = vpop.permute.xlu0 %311
    %v314 = vsel %vm138, %v253, 0
    %v317 = vsel %vm267, %v312, 0
    %319 = vmatprep.subr.bf16.mxu0 0
    %320 = vmatpush1.bf16.msra.mxu0 %v317
    %321 = vmatprep.subr.bf16.mxu0 0
    %322 = vmatpush1.bf16.msra.mxu0 0
    %323 = vmatprep.subr.bf16.mxu0 0
    %324 = vmatpush1.bf16.msra.mxu0 0
    %325 = vmatprep.subr.bf16.mxu0 0
    %326 = vmatpush1.bf16.msra.mxu0 0
    %327 = vmatprep.subr.bf16.mxu0 0
    %328 = vmatpush1.bf16.msra.mxu0 0
    %329 = vmatprep.subr.bf16.mxu0 0
    %330 = vmatpush1.bf16.msra.mxu0 0
    %331 = vmatprep.subr.bf16.mxu0 0
    %332 = vmatpush1.bf16.msra.mxu0 0
    %333 = vmatprep.subr.bf16.mxu0 0
    %334 = vmatpush1.bf16.msra.mxu0 0
    %335 = vmatprep.subr.bf16.mxu0 0
    %336 = vmatpush1.bf16.msra.mxu0 0
    %337 = vmatprep.subr.bf16.mxu0 0
    %338 = vmatpush1.bf16.msra.mxu0 0
    %339 = vmatprep.subr.bf16.mxu0 0
    %340 = vmatpush1.bf16.msra.mxu0 0
    %341 = vmatprep.subr.bf16.mxu0 0
    %342 = vmatpush1.bf16.msra.mxu0 0
    %343 = vmatprep.subr.bf16.mxu0 0
    %344 = vmatpush1.bf16.msra.mxu0 0
    %345 = vmatprep.subr.bf16.mxu0 0
    %346 = vmatpush1.bf16.msra.mxu0 0
    %347 = vmatprep.subr.bf16.mxu0 0
    %348 = vmatpush1.bf16.msra.mxu0 0
    %349 = vmatprep.subr.bf16.mxu0 0
    %350 = vmatpush1.bf16.msra.mxu0 0
    %351 = vmatprep.mubr.bf16.mxu0 0
    %352 = vmatmul.mubr.bf16.gmra.mrb[0].mxu0 %v314
    %v353 = vpop.f32.mrb[0].mxu0
    %v354 = vadd.f32 0.0, %v353
    %v355 = vpop.f32.mrb[0].mxu0
    %v356 = vpop.f32.mrb[0].mxu0
    %v357 = vpop.f32.mrb[0].mxu0
    %358 = vdwg.mxu0
    %v359 = vrcp.pop %v258
    %v360 = vrcp.pop %v261
    %v361 = vmul.f32 %v306, %v359
    %v362 = vmul.f32 %v354, %v360
    %v363 = vpack.c.bf16 %v362, %v361
    %364 = vst.msk [vmem:[#allocation2] sm:$0xff] %vm138, %v363
    %366 = vrot.lane.b32.xlu0 %v126, 120
    %v367 = vpop.permute.xlu0 %366
    %368 = vrot.lane.b32.xlu0 %v128, 88
    %v369 = vpop.permute.xlu0 %368
    %v371 = vsel %vm138, %v367, 0
    %v374 = vsel %vm138, %v369, 0
    %376 = vmatprep.subr.bf16.mxu0 0
    %377 = vmatpush1.bf16.xpose.msra.mxu0 %v374
    %378 = vmatprep.subr.bf16.mxu0 0
    %379 = vmatpush1.bf16.xpose.msra.mxu0 0
    %380 = vmatprep.subr.bf16.mxu0 0
    %381 = vmatpush1.bf16.xpose.msra.mxu0 0
    %382 = vmatprep.subr.bf16.mxu0 0
    %383 = vmatpush1.bf16.xpose.msra.mxu0 0
    %384 = vmatprep.subr.bf16.mxu0 0
    %385 = vmatpush1.bf16.xpose.msra.mxu0 0
    %386 = vmatprep.subr.bf16.mxu0 0
    %387 = vmatpush1.bf16.xpose.msra.mxu0 0
    %388 = vmatprep.subr.bf16.mxu0 0
    %389 = vmatpush1.bf16.xpose.msra.mxu0 0
    %390 = vmatprep.subr.bf16.mxu0 0
    %391 = vmatpush1.bf16.xpose.msra.mxu0 0
    %392 = vmatprep.subr.bf16.mxu0 0
    %393 = vmatpush1.bf16.xpose.msra.mxu0 0
    %394 = vmatprep.subr.bf16.mxu0 0
    %395 = vmatpush1.bf16.xpose.msra.mxu0 0
    %396 = vmatprep.subr.bf16.mxu0 0
    %397 = vmatpush1.bf16.xpose.msra.mxu0 0
    %398 = vmatprep.subr.bf16.mxu0 0
    %399 = vmatpush1.bf16.xpose.msra.mxu0 0
    %400 = vmatprep.subr.bf16.mxu0 0
    %401 = vmatpush1.bf16.xpose.msra.mxu0 0
    %402 = vmatprep.subr.bf16.mxu0 0
    %403 = vmatpush1.bf16.xpose.msra.mxu0 0
    %404 = vmatprep.subr.bf16.mxu0 0
    %405 = vmatpush1.bf16.xpose.msra.mxu0 0
    %406 = vmatprep.subr.bf16.mxu0 0
    %407 = vmatpush1.bf16.xpose.msra.mxu0 0
    %408 = vmatprep.mubr.bf16.mxu0 0
    %409 = vmatmul.mubr.bf16.gmra.mrb[0].mxu0 %v371
    %v410 = vpop.f32.mrb[0].mxu0
    %v411 = vadd.f32 0.0, %v410
    %v412 = vpop.f32.mrb[0].mxu0
    %v413 = vpop.f32.mrb[0].mxu0
    %v414 = vpop.f32.mrb[0].mxu0
    %415 = vdwg.mxu0
    %417 = vrot.lane.b32.xlu0 %v127, 120
    %v418 = vpop.permute.xlu0 %417
    %419 = vrot.lane.b32.xlu0 %v129, 88
    %v420 = vpop.permute.xlu0 %419
    %v422 = vsel %vm138, %v418, 0
    %v425 = vsel %vm138, %v420, 0
    %427 = vmatprep.subr.bf16.mxu0 0
    %428 = vmatpush1.bf16.xpose.msra.mxu0 %v425
    %429 = vmatprep.subr.bf16.mxu0 0
    %430 = vmatpush1.bf16.xpose.msra.mxu0 0
    %431 = vmatprep.subr.bf16.mxu0 0
    %432 = vmatpush1.bf16.xpose.msra.mxu0 0
    %433 = vmatprep.subr.bf16.mxu0 0
    %434 = vmatpush1.bf16.xpose.msra.mxu0 0
    %435 = vmatprep.subr.bf16.mxu0 0
    %436 = vmatpush1.bf16.xpose.msra.mxu0 0
    %437 = vmatprep.subr.bf16.mxu0 0
    %438 = vmatpush1.bf16.xpose.msra.mxu0 0
    %439 = vmatprep.subr.bf16.mxu0 0
    %440 = vmatpush1.bf16.xpose.msra.mxu0 0
    %441 = vmatprep.subr.bf16.mxu0 0
    %442 = vmatpush1.bf16.xpose.msra.mxu0 0
    %443 = vmatprep.subr.bf16.mxu0 0
    %444 = vmatpush1.bf16.xpose.msra.mxu0 0
    %445 = vmatprep.subr.bf16.mxu0 0
    %446 = vmatpush1.bf16.xpose.msra.mxu0 0
    %447 = vmatprep.subr.bf16.mxu0 0
    %448 = vmatpush1.bf16.xpose.msra.mxu0 0
    %449 = vmatprep.subr.bf16.mxu0 0
    %450 = vmatpush1.bf16.xpose.msra.mxu0 0
    %451 = vmatprep.subr.bf16.mxu0 0
    %452 = vmatpush1.bf16.xpose.msra.mxu0 0
    %453 = vmatprep.subr.bf16.mxu0 0
    %454 = vmatpush1.bf16.xpose.msra.mxu0 0
    %455 = vmatprep.subr.bf16.mxu0 0
    %456 = vmatpush1.bf16.xpose.msra.mxu0 0
    %457 = vmatprep.subr.bf16.mxu0 0
    %458 = vmatpush1.bf16.xpose.msra.mxu0 0
    %459 = vmatprep.mubr.bf16.mxu0 0
    %460 = vmatmul.mubr.bf16.gmra.mrb[0].mxu0 %v422
    %v461 = vpop.f32.mrb[0].mxu0
    %v462 = vadd.f32 0.0, %v461
    %v463 = vpop.f32.mrb[0].mxu0
    %v464 = vpop.f32.mrb[0].mxu0
    %v465 = vpop.f32.mrb[0].mxu0
    %466 = vdwg.mxu0
    %v467 = vsel %vm235, -inf, %v411
    %v468 = vsel %vm235, -inf, %v462
    %v469 = vsel %vm138, %v467, -inf
    %470 = vmax.xlane.f32.xlu0 %v469
    %v471 = vpop.xlane.xlu0 %470
    %v472 = vsel %vm138, %v468, -inf
    %473 = vmax.xlane.f32.xlu0 %v472
    %v474 = vpop.xlane.xlu0 %473
    %v475 = vsub.f32 %v467, %v471
    %v476 = vsub.f32 %v468, %v474
    %v477 = vpack.c.bf16 %v475, %v475
    %v478 = vpack.c.bf16 %v476, %v476
    %v480 = vmul.bf16 %v477, 1069105081
    %v481 = vpow.bf16.pop %v480
    %v483 = vmul.bf16 %v478, 1069105081
    %v484 = vpow.bf16.pop %v483
    %v485 = vunpack.c.l.bf16 %v481
    %v486 = vunpack.c.l.bf16 %v484
    %v487 = vsel %vm138, %v485, 0.0
    %488 = vadd.xlane.f32.xlu0 %v487
    %v489 = vpop.xlane.xlu0 %488
    %v490 = vsel %vm138, %v486, 0.0
    %491 = vadd.xlane.f32.xlu0 %v490
    %v492 = vpop.xlane.xlu0 %491
    %493 = vrot.lane.b32.xlu0 %v128, 56
    %v494 = vpop.permute.xlu0 %493
    %v496 = vsel %vm138, %v481, 0
    %v499 = vsel %vm267, %v494, 0
    %501 = vmatprep.subr.bf16.mxu0 0
    %502 = vmatpush1.bf16.msra.mxu0 %v499
    %503 = vmatprep.subr.bf16.mxu0 0
    %504 = vmatpush1.bf16.msra.mxu0 0
    %505 = vmatprep.subr.bf16.mxu0 0
    %506 = vmatpush1.bf16.msra.mxu0 0
    %507 = vmatprep.subr.bf16.mxu0 0
    %508 = vmatpush1.bf16.msra.mxu0 0
    %509 = vmatprep.subr.bf16.mxu0 0
    %510 = vmatpush1.bf16.msra.mxu0 0
    %511 = vmatprep.subr.bf16.mxu0 0
    %512 = vmatpush1.bf16.msra.mxu0 0
    %513 = vmatprep.subr.bf16.mxu0 0
    %514 = vmatpush1.bf16.msra.mxu0 0
    %515 = vmatprep.subr.bf16.mxu0 0
    %516 = vmatpush1.bf16.msra.mxu0 0
    %517 = vmatprep.subr.bf16.mxu0 0
    %518 = vmatpush1.bf16.msra.mxu0 0
    %519 = vmatprep.subr.bf16.mxu0 0
    %520 = vmatpush1.bf16.msra.mxu0 0
    %521 = vmatprep.subr.bf16.mxu0 0
    %522 = vmatpush1.bf16.msra.mxu0 0
    %523 = vmatprep.subr.bf16.mxu0 0
    %524 = vmatpush1.bf16.msra.mxu0 0
    %525 = vmatprep.subr.bf16.mxu0 0
    %526 = vmatpush1.bf16.msra.mxu0 0
    %527 = vmatprep.subr.bf16.mxu0 0
    %528 = vmatpush1.bf16.msra.mxu0 0
    %529 = vmatprep.subr.bf16.mxu0 0
    %530 = vmatpush1.bf16.msra.mxu0 0
    %531 = vmatprep.subr.bf16.mxu0 0
    %532 = vmatpush1.bf16.msra.mxu0 0
    %533 = vmatprep.mubr.bf16.mxu0 0
    %534 = vmatmul.mubr.bf16.gmra.mrb[0].mxu0 %v496
    %v535 = vpop.f32.mrb[0].mxu0
    %v536 = vadd.f32 0.0, %v535
    %v537 = vpop.f32.mrb[0].mxu0
    %v538 = vpop.f32.mrb[0].mxu0
    %v539 = vpop.f32.mrb[0].mxu0
    %540 = vdwg.mxu0
    %541 = vrot.lane.b32.xlu0 %v129, 56
    %v542 = vpop.permute.xlu0 %541
    %v544 = vsel %vm138, %v484, 0
    %v547 = vsel %vm267, %v542, 0
    %549 = vmatprep.subr.bf16.mxu0 0
    %550 = vmatpush1.bf16.msra.mxu0 %v547
    %551 = vmatprep.subr.bf16.mxu0 0
    %552 = vmatpush1.bf16.msra.mxu0 0
    %553 = vmatprep.subr.bf16.mxu0 0
    %554 = vmatpush1.bf16.msra.mxu0 0
    %555 = vmatprep.subr.bf16.mxu0 0
    %556 = vmatpush1.bf16.msra.mxu0 0
    %557 = vmatprep.subr.bf16.mxu0 0
    %558 = vmatpush1.bf16.msra.mxu0 0
    %559 = vmatprep.subr.bf16.mxu0 0
    %560 = vmatpush1.bf16.msra.mxu0 0
    %561 = vmatprep.subr.bf16.mxu0 0
    %562 = vmatpush1.bf16.msra.mxu0 0
    %563 = vmatprep.subr.bf16.mxu0 0
    %564 = vmatpush1.bf16.msra.mxu0 0
    %565 = vmatprep.subr.bf16.mxu0 0
    %566 = vmatpush1.bf16.msra.mxu0 0
    %567 = vmatprep.subr.bf16.mxu0 0
    %568 = vmatpush1.bf16.msra.mxu0 0
    %569 = vmatprep.subr.bf16.mxu0 0
    %570 = vmatpush1.bf16.msra.mxu0 0
    %571 = vmatprep.subr.bf16.mxu0 0
    %572 = vmatpush1.bf16.msra.mxu0 0
    %573 = vmatprep.subr.bf16.mxu0 0
    %574 = vmatpush1.bf16.msra.mxu0 0
    %575 = vmatprep.subr.bf16.mxu0 0
    %576 = vmatpush1.bf16.msra.mxu0 0
    %577 = vmatprep.subr.bf16.mxu0 0
    %578 = vmatpush1.bf16.msra.mxu0 0
    %579 = vmatprep.subr.bf16.mxu0 0
    %580 = vmatpush1.bf16.msra.mxu0 0
    %581 = vmatprep.mubr.bf16.mxu0 0
    %582 = vmatmul.mubr.bf16.gmra.mrb[0].mxu0 %v544
    %v583 = vpop.f32.mrb[0].mxu0
    %v584 = vadd.f32 0.0, %v583
    %v585 = vpop.f32.mrb[0].mxu0
    %v586 = vpop.f32.mrb[0].mxu0
    %v587 = vpop.f32.mrb[0].mxu0
    %588 = vdwg.mxu0
    %v589 = vrcp.pop %v489
    %v590 = vrcp.pop %v492
    %v591 = vmul.f32 %v536, %v589
    %v592 = vmul.f32 %v584, %v590
    %v593 = vpack.c.bf16 %v592, %v591
    %595 = vrot.lane.b32.xlu0 %v593, 8
    %v596 = vpop.permute.xlu0 %595
    %vm598 = vcmask 130112
    %599 = vst.msk [vmem:[#allocation2] sm:$0xff] %vm598, %v596
    %600 = vrot.lane.b32.xlu0 %v126, 112
    %v601 = vpop.permute.xlu0 %600
    %602 = vrot.lane.b32.xlu0 %v128, 80
    %v603 = vpop.permute.xlu0 %602
    %v605 = vsel %vm138, %v601, 0
    %v608 = vsel %vm138, %v603, 0
    %610 = vmatprep.subr.bf16.mxu0 0
    %611 = vmatpush1.bf16.xpose.msra.mxu0 %v608
    %612 = vmatprep.subr.bf16.mxu0 0
    %613 = vmatpush1.bf16.xpose.msra.mxu0 0
    %614 = vmatprep.subr.bf16.mxu0 0
    %615 = vmatpush1.bf16.xpose.msra.mxu0 0
    %616 = vmatprep.subr.bf16.mxu0 0
    %617 = vmatpush1.bf16.xpose.msra.mxu0 0
    %618 = vmatprep.subr.bf16.mxu0 0
    %619 = vmatpush1.bf16.xpose.msra.mxu0 0
    %620 = vmatprep.subr.bf16.mxu0 0
    %621 = vmatpush1.bf16.xpose.msra.mxu0 0
    %622 = vmatprep.subr.bf16.mxu0 0
    %623 = vmatpush1.bf16.xpose.msra.mxu0 0
    %624 = vmatprep.subr.bf16.mxu0 0
    %625 = vmatpush1.bf16.xpose.msra.mxu0 0
    %626 = vmatprep.subr.bf16.mxu0 0
    %627 = vmatpush1.bf16.xpose.msra.mxu0 0
    %628 = vmatprep.subr.bf16.mxu0 0
    %629 = vmatpush1.bf16.xpose.msra.mxu0 0
    %630 = vmatprep.subr.bf16.mxu0 0
    %631 = vmatpush1.bf16.xpose.msra.mxu0 0
    %632 = vmatprep.subr.bf16.mxu0 0
    %633 = vmatpush1.bf16.xpose.msra.mxu0 0
    %634 = vmatprep.subr.bf16.mxu0 0
    %635 = vmatpush1.bf16.xpose.msra.mxu0 0
    %636 = vmatprep.subr.bf16.mxu0 0
    %637 = vmatpush1.bf16.xpose.msra.mxu0 0
    %638 = vmatprep.subr.bf16.mxu0 0
    %639 = vmatpush1.bf16.xpose.msra.mxu0 0
    %640 = vmatprep.subr.bf16.mxu0 0
    %641 = vmatpush1.bf16.xpose.msra.mxu0 0
    %642 = vmatprep.mubr.bf16.mxu0 0
    %643 = vmatmul.mubr.bf16.gmra.mrb[0].mxu0 %v605
    %v644 = vpop.f32.mrb[0].mxu0
    %v645 = vadd.f32 0.0, %v644
    %v646 = vpop.f32.mrb[0].mxu0
    %v647 = vpop.f32.mrb[0].mxu0
    %v648 = vpop.f32.mrb[0].mxu0
    %649 = vdwg.mxu0
    %650 = vrot.lane.b32.xlu0 %v127, 112
    %v651 = vpop.permute.xlu0 %650
    %652 = vrot.lane.b32.xlu0 %v129, 80
    %v653 = vpop.permute.xlu0 %652
    %v655 = vsel %vm138, %v651, 0
    %v658 = vsel %vm138, %v653, 0
    %660 = vmatprep.subr.bf16.mxu0 0
    %661 = vmatpush1.bf16.xpose.msra.mxu0 %v658
    %662 = vmatprep.subr.bf16.mxu0 0
    %663 = vmatpush1.bf16.xpose.msra.mxu0 0
    %664 = vmatprep.subr.bf16.mxu0 0
    %665 = vmatpush1.bf16.xpose.msra.mxu0 0
    %666 = vmatprep.subr.bf16.mxu0 0
    %667 = vmatpush1.bf16.xpose.msra.mxu0 0
    %668 = vmatprep.subr.bf16.mxu0 0
    %669 = vmatpush1.bf16.xpose.msra.mxu0 0
    %670 = vmatprep.subr.bf16.mxu0 0
    %671 = vmatpush1.bf16.xpose.msra.mxu0 0
    %672 = vmatprep.subr.bf16.mxu0 0
    %673 = vmatpush1.bf16.xpose.msra.mxu0 0
    %674 = vmatprep.subr.bf16.mxu0 0
    %675 = vmatpush1.bf16.xpose.msra.mxu0 0
    %676 = vmatprep.subr.bf16.mxu0 0
    %677 = vmatpush1.bf16.xpose.msra.mxu0 0
    %678 = vmatprep.subr.bf16.mxu0 0
    %679 = vmatpush1.bf16.xpose.msra.mxu0 0
    %680 = vmatprep.subr.bf16.mxu0 0
    %681 = vmatpush1.bf16.xpose.msra.mxu0 0
    %682 = vmatprep.subr.bf16.mxu0 0
    %683 = vmatpush1.bf16.xpose.msra.mxu0 0
    %684 = vmatprep.subr.bf16.mxu0 0
    %685 = vmatpush1.bf16.xpose.msra.mxu0 0
    %686 = vmatprep.subr.bf16.mxu0 0
    %687 = vmatpush1.bf16.xpose.msra.mxu0 0
    %688 = vmatprep.subr.bf16.mxu0 0
    %689 = vmatpush1.bf16.xpose.msra.mxu0 0
    %690 = vmatprep.subr.bf16.mxu0 0
    %691 = vmatpush1.bf16.xpose.msra.mxu0 0
    %692 = vmatprep.mubr.bf16.mxu0 0
    %693 = vmatmul.mubr.bf16.gmra.mrb[0].mxu0 %v655
    %v694 = vpop.f32.mrb[0].mxu0
    %v695 = vadd.f32 0.0, %v694
    %v696 = vpop.f32.mrb[0].mxu0
    %v697 = vpop.f32.mrb[0].mxu0
    %v698 = vpop.f32.mrb[0].mxu0
    %699 = vdwg.mxu0
    %v700 = vsel %vm235, -inf, %v645
    %v701 = vsel %vm235, -inf, %v695
    %v702 = vsel %vm138, %v700, -inf
    %703 = vmax.xlane.f32.xlu0 %v702
    %v704 = vpop.xlane.xlu0 %703
    %v705 = vsel %vm138, %v701, -inf
    %706 = vmax.xlane.f32.xlu0 %v705
    %v707 = vpop.xlane.xlu0 %706
    %v708 = vsub.f32 %v700, %v704
    %v709 = vsub.f32 %v701, %v707
    %v710 = vpack.c.bf16 %v708, %v708
    %v711 = vpack.c.bf16 %v709, %v709
    %v713 = vmul.bf16 %v710, 1069105081
    %v714 = vpow.bf16.pop %v713
    %v716 = vmul.bf16 %v711, 1069105081
    %v717 = vpow.bf16.pop %v716
    %v718 = vunpack.c.l.bf16 %v714
    %v719 = vunpack.c.l.bf16 %v717
    %v720 = vsel %vm138, %v718, 0.0
    %721 = vadd.xlane.f32.xlu0 %v720
    %v722 = vpop.xlane.xlu0 %721
    %v723 = vsel %vm138, %v719, 0.0
    %724 = vadd.xlane.f32.xlu0 %v723
    %v725 = vpop.xlane.xlu0 %724
    %726 = vrot.lane.b32.xlu0 %v128, 48
    %v727 = vpop.permute.xlu0 %726
    %v729 = vsel %vm138, %v714, 0
    %v732 = vsel %vm267, %v727, 0
    %734 = vmatprep.subr.bf16.mxu0 0
    %735 = vmatpush1.bf16.msra.mxu0 %v732
    %736 = vmatprep.subr.bf16.mxu0 0
    %737 = vmatpush1.bf16.msra.mxu0 0
    %738 = vmatprep.subr.bf16.mxu0 0
    %739 = vmatpush1.bf16.msra.mxu0 0
    %740 = vmatprep.subr.bf16.mxu0 0
    %741 = vmatpush1.bf16.msra.mxu0 0
    %742 = vmatprep.subr.bf16.mxu0 0
    %743 = vmatpush1.bf16.msra.mxu0 0
    %744 = vmatprep.subr.bf16.mxu0 0
    %745 = vmatpush1.bf16.msra.mxu0 0
    %746 = vmatprep.subr.bf16.mxu0 0
    %747 = vmatpush1.bf16.msra.mxu0 0
    %748 = vmatprep.subr.bf16.mxu0 0
    %749 = vmatpush1.bf16.msra.mxu0 0
    %750 = vmatprep.subr.bf16.mxu0 0
    %751 = vmatpush1.bf16.msra.mxu0 0
    %752 = vmatprep.subr.bf16.mxu0 0
    %753 = vmatpush1.bf16.msra.mxu0 0
    %754 = vmatprep.subr.bf16.mxu0 0
    %755 = vmatpush1.bf16.msra.mxu0 0
    %756 = vmatprep.subr.bf16.mxu0 0
    %757 = vmatpush1.bf16.msra.mxu0 0
    %758 = vmatprep.subr.bf16.mxu0 0
    %759 = vmatpush1.bf16.msra.mxu0 0
    %760 = vmatprep.subr.bf16.mxu0 0
    %761 = vmatpush1.bf16.msra.mxu0 0
    %762 = vmatprep.subr.bf16.mxu0 0
    %763 = vmatpush1.bf16.msra.mxu0 0
    %764 = vmatprep.subr.bf16.mxu0 0
    %765 = vmatpush1.bf16.msra.mxu0 0
    %766 = vmatprep.mubr.bf16.mxu0 0
    %767 = vmatmul.mubr.bf16.gmra.mrb[0].mxu0 %v729
    %v768 = vpop.f32.mrb[0].mxu0
    %v769 = vadd.f32 0.0, %v768
    %v770 = vpop.f32.mrb[0].mxu0
    %v771 = vpop.f32.mrb[0].mxu0
    %v772 = vpop.f32.mrb[0].mxu0
    %773 = vdwg.mxu0
    %774 = vrot.lane.b32.xlu0 %v129, 48
    %v775 = vpop.permute.xlu0 %774
    %v777 = vsel %vm138, %v717, 0
    %v780 = vsel %vm267, %v775, 0
    %782 = vmatprep.subr.bf16.mxu0 0
    %783 = vmatpush1.bf16.msra.mxu0 %v780
    %784 = vmatprep.subr.bf16.mxu0 0
    %785 = vmatpush1.bf16.msra.mxu0 0
    %786 = vmatprep.subr.bf16.mxu0 0
    %787 = vmatpush1.bf16.msra.mxu0 0
    %788 = vmatprep.subr.bf16.mxu0 0
    %789 = vmatpush1.bf16.msra.mxu0 0
    %790 = vmatprep.subr.bf16.mxu0 0
    %791 = vmatpush1.bf16.msra.mxu0 0
    %792 = vmatprep.subr.bf16.mxu0 0
    %793 = vmatpush1.bf16.msra.mxu0 0
    %794 = vmatprep.subr.bf16.mxu0 0
    %795 = vmatpush1.bf16.msra.mxu0 0
    %796 = vmatprep.subr.bf16.mxu0 0
    %797 = vmatpush1.bf16.msra.mxu0 0
    %798 = vmatprep.subr.bf16.mxu0 0
    %799 = vmatpush1.bf16.msra.mxu0 0
    %800 = vmatprep.subr.bf16.mxu0 0
    %801 = vmatpush1.bf16.msra.mxu0 0
    %802 = vmatprep.subr.bf16.mxu0 0
    %803 = vmatpush1.bf16.msra.mxu0 0
    %804 = vmatprep.subr.bf16.mxu0 0
    %805 = vmatpush1.bf16.msra.mxu0 0
    %806 = vmatprep.subr.bf16.mxu0 0
    %807 = vmatpush1.bf16.msra.mxu0 0
    %808 = vmatprep.subr.bf16.mxu0 0
    %809 = vmatpush1.bf16.msra.mxu0 0
    %810 = vmatprep.subr.bf16.mxu0 0
    %811 = vmatpush1.bf16.msra.mxu0 0
    %812 = vmatprep.subr.bf16.mxu0 0
    %813 = vmatpush1.bf16.msra.mxu0 0
    %814 = vmatprep.mubr.bf16.mxu0 0
    %815 = vmatmul.mubr.bf16.gmra.mrb[0].mxu0 %v777
    %v816 = vpop.f32.mrb[0].mxu0
    %v817 = vadd.f32 0.0, %v816
    %v818 = vpop.f32.mrb[0].mxu0
    %v819 = vpop.f32.mrb[0].mxu0
    %v820 = vpop.f32.mrb[0].mxu0
    %821 = vdwg.mxu0
    %v822 = vrcp.pop %v722
    %v823 = vrcp.pop %v725
    %v824 = vmul.f32 %v769, %v822
    %v825 = vmul.f32 %v817, %v823
    %v826 = vpack.c.bf16 %v825, %v824
    %828 = vrot.lane.b32.xlu0 %v826, 16
    %v829 = vpop.permute.xlu0 %828
    %vm831 = vcmask 195712
    %832 = vst.msk [vmem:[#allocation2] sm:$0xff] %vm831, %v829
    %833 = vrot.lane.b32.xlu0 %v126, 104
    %v834 = vpop.permute.xlu0 %833
    %835 = vrot.lane.b32.xlu0 %v128, 72
    %v836 = vpop.permute.xlu0 %835
    %v838 = vsel %vm138, %v834, 0
    %v841 = vsel %vm138, %v836, 0
    %843 = vmatprep.subr.bf16.mxu0 0
    %844 = vmatpush1.bf16.xpose.msra.mxu0 %v841
    %845 = vmatprep.subr.bf16.mxu0 0
    %846 = vmatpush1.bf16.xpose.msra.mxu0 0
    %847 = vmatprep.subr.bf16.mxu0 0
    %848 = vmatpush1.bf16.xpose.msra.mxu0 0
    %849 = vmatprep.subr.bf16.mxu0 0
    %850 = vmatpush1.bf16.xpose.msra.mxu0 0
    %851 = vmatprep.subr.bf16.mxu0 0
    %852 = vmatpush1.bf16.xpose.msra.mxu0 0
    %853 = vmatprep.subr.bf16.mxu0 0
    %854 = vmatpush1.bf16.xpose.msra.mxu0 0
    %855 = vmatprep.subr.bf16.mxu0 0
    %856 = vmatpush1.bf16.xpose.msra.mxu0 0
    %857 = vmatprep.subr.bf16.mxu0 0
    %858 = vmatpush1.bf16.xpose.msra.mxu0 0
    %859 = vmatprep.subr.bf16.mxu0 0
    %860 = vmatpush1.bf16.xpose.msra.mxu0 0
    %861 = vmatprep.subr.bf16.mxu0 0
    %862 = vmatpush1.bf16.xpose.msra.mxu0 0
    %863 = vmatprep.subr.bf16.mxu0 0
    %864 = vmatpush1.bf16.xpose.msra.mxu0 0
    %865 = vmatprep.subr.bf16.mxu0 0
    %866 = vmatpush1.bf16.xpose.msra.mxu0 0
    %867 = vmatprep.subr.bf16.mxu0 0
    %868 = vmatpush1.bf16.xpose.msra.mxu0 0
    %869 = vmatprep.subr.bf16.mxu0 0
    %870 = vmatpush1.bf16.xpose.msra.mxu0 0
    %871 = vmatprep.subr.bf16.mxu0 0
    %872 = vmatpush1.bf16.xpose.msra.mxu0 0
    %873 = vmatprep.subr.bf16.mxu0 0
    %874 = vmatpush1.bf16.xpose.msra.mxu0 0
    %875 = vmatprep.mubr.bf16.mxu0 0
    %876 = vmatmul.mubr.bf16.gmra.mrb[0].mxu0 %v838
    %v877 = vpop.f32.mrb[0].mxu0
    %v878 = vadd.f32 0.0, %v877
    %v879 = vpop.f32.mrb[0].mxu0
    %v880 = vpop.f32.mrb[0].mxu0
    %v881 = vpop.f32.mrb[0].mxu0
    %882 = vdwg.mxu0
    %883 = vrot.lane.b32.xlu0 %v127, 104
    %v884 = vpop.permute.xlu0 %883
    %885 = vrot.lane.b32.xlu0 %v129, 72
    %v886 = vpop.permute.xlu0 %885
    %v888 = vsel %vm138, %v884, 0
    %v891 = vsel %vm138, %v886, 0
    %893 = vmatprep.subr.bf16.mxu0 0
    %894 = vmatpush1.bf16.xpose.msra.mxu0 %v891
    %895 = vmatprep.subr.bf16.mxu0 0
    %896 = vmatpush1.bf16.xpose.msra.mxu0 0
    %897 = vmatprep.subr.bf16.mxu0 0
    %898 = vmatpush1.bf16.xpose.msra.mxu0 0
    %899 = vmatprep.subr.bf16.mxu0 0
    %900 = vmatpush1.bf16.xpose.msra.mxu0 0
    %901 = vmatprep.subr.bf16.mxu0 0
    %902 = vmatpush1.bf16.xpose.msra.mxu0 0
    %903 = vmatprep.subr.bf16.mxu0 0
    %904 = vmatpush1.bf16.xpose.msra.mxu0 0
    %905 = vmatprep.subr.bf16.mxu0 0
    %906 = vmatpush1.bf16.xpose.msra.mxu0 0
    %907 = vmatprep.subr.bf16.mxu0 0
    %908 = vmatpush1.bf16.xpose.msra.mxu0 0
    %909 = vmatprep.subr.bf16.mxu0 0
    %910 = vmatpush1.bf16.xpose.msra.mxu0 0
    %911 = vmatprep.subr.bf16.mxu0 0
    %912 = vmatpush1.bf16.xpose.msra.mxu0 0
    %913 = vmatprep.subr.bf16.mxu0 0
    %914 = vmatpush1.bf16.xpose.msra.mxu0 0
    %915 = vmatprep.subr.bf16.mxu0 0
    %916 = vmatpush1.bf16.xpose.msra.mxu0 0
    %917 = vmatprep.subr.bf16.mxu0 0
    %918 = vmatpush1.bf16.xpose.msra.mxu0 0
    %919 = vmatprep.subr.bf16.mxu0 0
    %920 = vmatpush1.bf16.xpose.msra.mxu0 0
    %921 = vmatprep.subr.bf16.mxu0 0
    %922 = vmatpush1.bf16.xpose.msra.mxu0 0
    %923 = vmatprep.subr.bf16.mxu0 0
    %924 = vmatpush1.bf16.xpose.msra.mxu0 0
    %925 = vmatprep.mubr.bf16.mxu0 0
    %926 = vmatmul.mubr.bf16.gmra.mrb[0].mxu0 %v888
    %v927 = vpop.f32.mrb[0].mxu0
    %v928 = vadd.f32 0.0, %v927
    %v929 = vpop.f32.mrb[0].mxu0
    %v930 = vpop.f32.mrb[0].mxu0
    %v931 = vpop.f32.mrb[0].mxu0
    %932 = vdwg.mxu0
    %v933 = vsel %vm235, -inf, %v878
    %v934 = vsel %vm235, -inf, %v928
    %v935 = vsel %vm138, %v933, -inf
    %936 = vmax.xlane.f32.xlu0 %v935
    %v937 = vpop.xlane.xlu0 %936
    %v938 = vsel %vm138, %v934, -inf
    %939 = vmax.xlane.f32.xlu0 %v938
    %v940 = vpop.xlane.xlu0 %939
    %v941 = vsub.f32 %v933, %v937
    %v942 = vsub.f32 %v934, %v940
    %v943 = vpack.c.bf16 %v941, %v941
    %v944 = vpack.c.bf16 %v942, %v942
    %v946 = vmul.bf16 %v943, 1069105081
    %v947 = vpow.bf16.pop %v946
    %v949 = vmul.bf16 %v944, 1069105081
    %v950 = vpow.bf16.pop %v949
    %v951 = vunpack.c.l.bf16 %v947
    %v952 = vunpack.c.l.bf16 %v950
    %v953 = vsel %vm138, %v951, 0.0
    %954 = vadd.xlane.f32.xlu0 %v953
    %v955 = vpop.xlane.xlu0 %954
    %v956 = vsel %vm138, %v952, 0.0
    %957 = vadd.xlane.f32.xlu0 %v956
    %v958 = vpop.xlane.xlu0 %957
    %959 = vrot.lane.b32.xlu0 %v128, 40
    %v960 = vpop.permute.xlu0 %959
    %v962 = vsel %vm138, %v947, 0
    %v965 = vsel %vm267, %v960, 0
    %967 = vmatprep.subr.bf16.mxu0 0
    %968 = vmatpush1.bf16.msra.mxu0 %v965
    %969 = vmatprep.subr.bf16.mxu0 0
    %970 = vmatpush1.bf16.msra.mxu0 0
    %971 = vmatprep.subr.bf16.mxu0 0
    %972 = vmatpush1.bf16.msra.mxu0 0
    %973 = vmatprep.subr.bf16.mxu0 0
    %974 = vmatpush1.bf16.msra.mxu0 0
    %975 = vmatprep.subr.bf16.mxu0 0
    %976 = vmatpush1.bf16.msra.mxu0 0
    %977 = vmatprep.subr.bf16.mxu0 0
    %978 = vmatpush1.bf16.msra.mxu0 0
    %979 = vmatprep.subr.bf16.mxu0 0
    %980 = vmatpush1.bf16.msra.mxu0 0
    %981 = vmatprep.subr.bf16.mxu0 0
    %982 = vmatpush1.bf16.msra.mxu0 0
    %983 = vmatprep.subr.bf16.mxu0 0
    %984 = vmatpush1.bf16.msra.mxu0 0
    %985 = vmatprep.subr.bf16.mxu0 0
    %986 = vmatpush1.bf16.msra.mxu0 0
    %987 = vmatprep.subr.bf16.mxu0 0
    %988 = vmatpush1.bf16.msra.mxu0 0
    %989 = vmatprep.subr.bf16.mxu0 0
    %990 = vmatpush1.bf16.msra.mxu0 0
    %991 = vmatprep.subr.bf16.mxu0 0
    %992 = vmatpush1.bf16.msra.mxu0 0
    %993 = vmatprep.subr.bf16.mxu0 0
    %994 = vmatpush1.bf16.msra.mxu0 0
    %995 = vmatprep.subr.bf16.mxu0 0
    %996 = vmatpush1.bf16.msra.mxu0 0
    %997 = vmatprep.subr.bf16.mxu0 0
    %998 = vmatpush1.bf16.msra.mxu0 0
    %999 = vmatprep.mubr.bf16.mxu0 0
    %1000 = vmatmul.mubr.bf16.gmra.mrb[0].mxu0 %v962
    %v1001 = vpop.f32.mrb[0].mxu0
    %v1002 = vadd.f32 0.0, %v1001
    %v1003 = vpop.f32.mrb[0].mxu0
    %v1004 = vpop.f32.mrb[0].mxu0
    %v1005 = vpop.f32.mrb[0].mxu0
    %1006 = vdwg.mxu0
    %1007 = vrot.lane.b32.xlu0 %v129, 40
    %v1008 = vpop.permute.xlu0 %1007
    %v1010 = vsel %vm138, %v950, 0
    %v1013 = vsel %vm267, %v1008, 0
    %1015 = vmatprep.subr.bf16.mxu0 0
    %1016 = vmatpush1.bf16.msra.mxu0 %v1013
    %1017 = vmatprep.subr.bf16.mxu0 0
    %1018 = vmatpush1.bf16.msra.mxu0 0
    %1019 = vmatprep.subr.bf16.mxu0 0
    %1020 = vmatpush1.bf16.msra.mxu0 0
    %1021 = vmatprep.subr.bf16.mxu0 0
    %1022 = vmatpush1.bf16.msra.mxu0 0
    %1023 = vmatprep.subr.bf16.mxu0 0
    %1024 = vmatpush1.bf16.msra.mxu0 0
    %1025 = vmatprep.subr.bf16.mxu0 0
    %1026 = vmatpush1.bf16.msra.mxu0 0
    %1027 = vmatprep.subr.bf16.mxu0 0
    %1028 = vmatpush1.bf16.msra.mxu0 0
    %1029 = vmatprep.subr.bf16.mxu0 0
    %1030 = vmatpush1.bf16.msra.mxu0 0
    %1031 = vmatprep.subr.bf16.mxu0 0
    %1032 = vmatpush1.bf16.msra.mxu0 0
    %1033 = vmatprep.subr.bf16.mxu0 0
    %1034 = vmatpush1.bf16.msra.mxu0 0
    %1035 = vmatprep.subr.bf16.mxu0 0
    %1036 = vmatpush1.bf16.msra.mxu0 0
    %1037 = vmatprep.subr.bf16.mxu0 0
    %1038 = vmatpush1.bf16.msra.mxu0 0
    %1039 = vmatprep.subr.bf16.mxu0 0
    %1040 = vmatpush1.bf16.msra.mxu0 0
    %1041 = vmatprep.subr.bf16.mxu0 0
    %1042 = vmatpush1.bf16.msra.mxu0 0
    %1043 = vmatprep.subr.bf16.mxu0 0
    %1044 = vmatpush1.bf16.msra.mxu0 0
    %1045 = vmatprep.subr.bf16.mxu0 0
    %1046 = vmatpush1.bf16.msra.mxu0 0
    %1047 = vmatprep.mubr.bf16.mxu0 0
    %1048 = vmatmul.mubr.bf16.gmra.mrb[0].mxu0 %v1010
    %v1049 = vpop.f32.mrb[0].mxu0
    %v1050 = vadd.f32 0.0, %v1049
    %v1051 = vpop.f32.mrb[0].mxu0
    %v1052 = vpop.f32.mrb[0].mxu0
    %v1053 = vpop.f32.mrb[0].mxu0
    %1054 = vdwg.mxu0
    %v1055 = vrcp.pop %v955
    %v1056 = vrcp.pop %v958
    %v1057 = vmul.f32 %v1002, %v1055
    %v1058 = vmul.f32 %v1050, %v1056
    %v1059 = vpack.c.bf16 %v1058, %v1057
    %1061 = vrot.lane.b32.xlu0 %v1059, 24
    %v1062 = vpop.permute.xlu0 %1061
    %vm1064 = vcmask 261312
    %1065 = vst.msk [vmem:[#allocation2] sm:$0xff] %vm1064, %v1062
    %v1066 = vld [vmem:[#allocation2] sm:$0xff]
    %v1067 = vld [vmem:[#allocation8] sm:$0xf]
    %v1068 = vld [vmem:[#allocation8 + $0x4] sm:$0xf]
    %v1069 = vld [vmem:[#allocation8 + $0x8] sm:$0xf]
    %v1070 = vld [vmem:[#allocation8 + $0xc] sm:$0xf]
    %v1071 = vld [vmem:[%s3] sm:$0x1]
    %v1073 = vlaneseq
    %v1074 = vshrl.u32 %v1073, 7
    %v1075 = vsub.s32 0, %v1074
    %v1076 = vrot.slane %v1071, %v1075
    %v1082 = vunpack.c.l.b16 %v1067
    %v1083 = vunpack.c.l.b16 %v1068
    %v1084 = vunpack.c.l.b16 %v1069
    %v1085 = vunpack.c.l.b16 %v1070
    %v1086 = vpack.c.b16 %v1083, %v1082
    %v1087 = vpack.c.b16 %v1085, %v1084
    %v1091 = vsel %vm79, %v1066, 0
    %1093 = vmatprep.subr.bf16.mxu0 0
    %1094 = vmatpush1.bf16.msra.mxu0 %v1086
    %1095 = vmatprep.subr.bf16.mxu0 0
    %1096 = vmatpush1.bf16.msra.mxu0 %v1087
    %1097 = vmatprep.subr.bf16.mxu0 0
    %1098 = vmatpush1.bf16.msra.mxu0 0
    %1099 = vmatprep.subr.bf16.mxu0 0
    %1100 = vmatpush1.bf16.msra.mxu0 0
    %1101 = vmatprep.subr.bf16.mxu0 0
    %1102 = vmatpush1.bf16.msra.mxu0 0
    %1103 = vmatprep.subr.bf16.mxu0 0
    %1104 = vmatpush1.bf16.msra.mxu0 0
    %1105 = vmatprep.subr.bf16.mxu0 0
    %1106 = vmatpush1.bf16.msra.mxu0 0
    %1107 = vmatprep.subr.bf16.mxu0 0
    %1108 = vmatpush1.bf16.msra.mxu0 0
    %1109 = vmatprep.subr.bf16.mxu0 0
    %1110 = vmatpush1.bf16.msra.mxu0 0
    %1111 = vmatprep.subr.bf16.mxu0 0
    %1112 = vmatpush1.bf16.msra.mxu0 0
    %1113 = vmatprep.subr.bf16.mxu0 0
    %1114 = vmatpush1.bf16.msra.mxu0 0
    %1115 = vmatprep.subr.bf16.mxu0 0
    %1116 = vmatpush1.bf16.msra.mxu0 0
    %1117 = vmatprep.subr.bf16.mxu0 0
    %1118 = vmatpush1.bf16.msra.mxu0 0
    %1119 = vmatprep.subr.bf16.mxu0 0
    %1120 = vmatpush1.bf16.msra.mxu0 0
    %1121 = vmatprep.subr.bf16.mxu0 0
    %1122 = vmatpush1.bf16.msra.mxu0 0
    %1123 = vmatprep.subr.bf16.mxu0 0
    %1124 = vmatpush1.bf16.msra.mxu0 0
    %1125 = vmatprep.mubr.bf16.mxu0 0
    %1126 = vmatmul.mubr.bf16.gmra.mrb[0].mxu0 %v1091
    %v1127 = vpop.f32.mrb[0].mxu0
    %v1128 = vadd.f32 %v1076, %v1127
    %v1129 = vpop.f32.mrb[0].mxu0
    %v1130 = vpop.f32.mrb[0].mxu0
    %v1131 = vadd.f32 %v1076, %v1130
    %v1132 = vpop.f32.mrb[0].mxu0
    %1133 = vdwg.mxu0
    %1134 = vst.msk [vmem:[#allocation9] sm:$0xff] %vm79, %v1128
    %1135 = vst.msk [vmem:[#allocation9 + $0x8] sm:$0xff] %vm79, %v1131
    // Predicated region
    $region30: #{tpu_custom_call.1} parent=1 // pred_check
      _
    $region31: #{tpu_custom_call.1} parent=1 // pred_check_branch
      %1137 = sbr.rel (0) target = $region33
    $region32: #{tpu_custom_call.1} parent=1 // pred_region
      %s1139 = ssub.s32 256, 256
      %1140 = vsyncadd [#allocation5], %s1139
      %s1141 = sshll.u32 [#allocation9], 4
      %s1142 = int_to_ptr.vmem [resolvable:$true] %s1141
      %1147 = dma.vmem_to_hbm [thread:$0]  %s1142, 256, %s4, [#allocation5], 128, 128, 8
    $region33: #{tpu_custom_call.1} parent=1 // pred_fallthru
      _
    // Predicated region
    $region34: #{tpu_custom_call.1} parent=1 // pred_check
      _
    $region35: #{tpu_custom_call.1} parent=1 // pred_check_branch
      %1149 = sbr.rel (0) target = $region37
    $region36: #{tpu_custom_call.1} parent=1 // pred_region
      %1150 = dma.done [#allocation5], 256
    $region37: #{tpu_custom_call.1} parent=1 // pred_fallthru
      _
    %1151 = vsyncpa [#allocation4], 1
    %1152 = vsyncpa [#allocation7], 1
    %1153 = vsyncpa [#allocation5], 1

</llo_original>
